<compile_context>
chip_gen: v7x
topology: tpu7x:2x2x1
jax: 0.10.0
libtpu: 0.0.40
codegen_flags: <defaults>
</compile_context>

<pallas_src>
import functools
import math

import jax
import jax.numpy as jnp
from jax import lax
from jax.experimental import pallas as pl
from jax.experimental.pallas import tpu as pltpu

EPS = 1e-5
NEG_BIG = -1e30


def _layernorm(x, g, b):
    mu = jnp.mean(x, axis=-1, keepdims=True)
    var = jnp.mean((x - mu) ** 2, axis=-1, keepdims=True)
    return (x - mu) * lax.rsqrt(var + EPS) * g + b


def kraken_block_kernel(x_ref, edges_ref,
                        ln1_g_ref, ln1_b_ref, ln2_g_ref, ln2_b_ref,
                        w_qkv_ref, b_qkv_ref, w_ao_ref, b_ao_ref,
                        w_fc_ref, b_fc_ref, w_mo_ref, b_mo_ref,
                        o_ref, *, n_head, n_splits):
    bf16, f32 = jnp.bfloat16, jnp.float32

    x = x_ref[0]                                   # (T, C) f32, one batch element
    T, C = x.shape
    hd = C // n_head
    cs = C // n_splits
    scale = 1.0 / math.sqrt(hd)

    # ---------------- attention branch: x = x + attn(ln_1(x)) ----------------
    h1 = _layernorm(x, ln1_g_ref[...], ln1_b_ref[...])
    # One wide lane-dense QKV matmul: (T, C) @ (C, 3C) -> (T, 3C).
    qkv = jnp.dot(h1.astype(bf16), w_qkv_ref[...],
                  preferred_element_type=f32) + b_qkv_ref[...]
    q = qkv[:, :C].reshape(T, n_head, hd).transpose(1, 0, 2).astype(bf16)      # (H,T,hd)
    k = qkv[:, C:2 * C].reshape(T, n_head, hd).transpose(1, 0, 2).astype(bf16)
    v = qkv[:, 2 * C:].reshape(T, n_head, hd).transpose(1, 0, 2).astype(bf16)

    # Per-head scores, batch dim = head: (H, T, T).
    att = lax.dot_general(q, k, (((2,), (2,)), ((0,), (0,))),
                          preferred_element_type=f32) * scale
    # Causal mask generated in-kernel (VPU work, hidden under the MXU matmuls).
    row = lax.broadcasted_iota(jnp.int32, (T, T), 0)
    col = lax.broadcasted_iota(jnp.int32, (T, T), 1)
    att = jnp.where((row >= col)[None, :, :], att, NEG_BIG)
    att = att - jnp.max(att, axis=-1, keepdims=True)
    p = jnp.exp(att)
    p = p * pl.reciprocal(jnp.sum(p, axis=-1, keepdims=True), approx=True)

    o_heads = lax.dot_general(p.astype(bf16), v,
                              (((2,), (1,)), ((0,), (0,))),
                              preferred_element_type=f32)                      # (H,T,hd)
    # Merge heads back to (T, C) and do ONE lane-dense output projection.
    y_cat = o_heads.transpose(1, 0, 2).reshape(T, C).astype(bf16)
    y = jnp.dot(y_cat, w_ao_ref[...], preferred_element_type=f32) + b_ao_ref[...]
    x = x + y

    # ---------------- edge aggregation ----------------
    residual = x
    xe = x + jnp.sum(edges_ref[:, 0], axis=0)      # (T, C)

    # ---------------- SplitMLP (batched over splits): residual + mlp(ln_2(xe))
    h2 = _layernorm(xe, ln2_g_ref[...], ln2_b_ref[...])
    h2s = h2.reshape(T, n_splits, cs).transpose(1, 0, 2).astype(bf16)          # (S,T,cs)
    hid = lax.dot_general(h2s, w_fc_ref[...], (((2,), (1,)), ((0,), (0,))),
                          preferred_element_type=f32) + b_fc_ref[...]          # (S,T,4cs)
    hid = jax.nn.gelu(hid, approximate=True).astype(bf16)
    mo = lax.dot_general(hid, w_mo_ref[...], (((2,), (1,)), ((0,), (0,))),
                         preferred_element_type=f32) + b_mo_ref[...]           # (S,T,cs)
    mlp = mo.transpose(1, 0, 2).reshape(T, C)

    o_ref[0] = residual + mlp


def kraken_block(x, edges, params, *, n_head, n_splits):
    B, T, C = x.shape
    E = edges.shape[0]
    f32, bf16 = jnp.float32, jnp.bfloat16

    # ---- wrapper-side weight prep (pure dtype casts, no zero-padding) ----
    w_qkv = params["w_qkv"].astype(bf16)          # (C, 3C)
    b_qkv = params["b_qkv"].astype(f32)           # (1, 3C)
    w_ao = params["w_ao"].astype(bf16)            # (C, C)
    b_ao = params["b_ao"].astype(f32)             # (1, C)
    w_fc = params["w_fc"].astype(bf16)            # (S, cs, 4cs)
    b_fc = params["b_fc"].astype(f32)             # (S, 1, 4cs)
    w_mo = params["w_mo"].astype(bf16)            # (S, 4cs, cs)
    b_mo = params["b_mo"].astype(f32)             # (S, 1, cs)

    def resident(a):
        # Weights/biases: constant index map -> stay in VMEM across grid steps.
        nd = a.ndim
        return pl.BlockSpec(a.shape, lambda b, _nd=nd: (0,) * _nd)

    in_specs = [
        pl.BlockSpec((1, T, C), lambda b: (b, 0, 0)),        # x       (per batch)
        pl.BlockSpec((E, 1, T, C), lambda b: (0, b, 0, 0)),  # edges   (per batch)
        resident(params["ln1_g"]), resident(params["ln1_b"]),
        resident(params["ln2_g"]), resident(params["ln2_b"]),
        resident(w_qkv), resident(b_qkv), resident(w_ao), resident(b_ao),
        resident(w_fc), resident(b_fc), resident(w_mo), resident(b_mo),
    ]

    kernel = functools.partial(kraken_block_kernel,
                               n_head=n_head, n_splits=n_splits)

    out = pl.pallas_call(
        kernel,
        out_shape=jax.ShapeDtypeStruct((B, T, C), f32),
        grid=(B,),                                            # batch-parallel axis
        in_specs=in_specs,
        out_specs=pl.BlockSpec((1, T, C), lambda b: (b, 0, 0)),
        compiler_params=pltpu.CompilerParams(
            dimension_semantics=("parallel",)),               # megacore / 2-TC split
    )(x, edges,
      params["ln1_g"], params["ln1_b"], params["ln2_g"], params["ln2_b"],
      w_qkv, b_qkv, w_ao, b_ao, w_fc, b_fc, w_mo, b_mo)
    return out


# ---------------------------- pure-JAX reference ----------------------------
def kraken_block_ref(x, edges, params, *, n_head, n_splits):
    B, T, C = x.shape
    hd = C // n_head
    cs = C // n_splits

    def ln(v, g, b):
        mu = v.mean(-1, keepdims=True)
        var = ((v - mu) ** 2).mean(-1, keepdims=True)
        return (v - mu) / jnp.sqrt(var + EPS) * g + b

    h = ln(x, params["ln1_g"], params["ln1_b"])
    qkv = h @ params["w_qkv"] + params["b_qkv"]
    q, k, v = jnp.split(qkv, 3, axis=-1)
    q = q.reshape(B, T, n_head, hd).transpose(0, 2, 1, 3)
    k = k.reshape(B, T, n_head, hd).transpose(0, 2, 1, 3)
    v = v.reshape(B, T, n_head, hd).transpose(0, 2, 1, 3)
    att = jnp.einsum("bhqd,bhkd->bhqk", q, k) / math.sqrt(hd)
    mask = jnp.tril(jnp.ones((T, T), dtype=bool))
    att = jnp.where(mask, att, -jnp.inf)
    p = jax.nn.softmax(att, axis=-1)
    y = jnp.einsum("bhqk,bhkd->bhqd", p, v).transpose(0, 2, 1, 3).reshape(B, T, C)
    y = y @ params["w_ao"] + params["b_ao"]
    x = x + y

    residual = x
    xe = x + jnp.sum(edges, axis=0)

    h2 = ln(xe, params["ln2_g"], params["ln2_b"])
    outs = []
    for s in range(n_splits):
        chunk = h2[..., s * cs:(s + 1) * cs]
        hid = jax.nn.gelu(chunk @ params["w_fc"][s] + params["b_fc"][s],
                          approximate=True)
        outs.append(hid @ params["w_mo"][s] + params["b_mo"][s])
    return residual + jnp.concatenate(outs, axis=-1)


def init_params(key, C, n_splits):
    cs = C // n_splits
    ks = jax.random.split(key, 8)
    std = 0.02
    return {
        "ln1_g": jnp.ones((1, C), jnp.float32),
        "ln1_b": jnp.zeros((1, C), jnp.float32),
        "ln2_g": jnp.ones((1, C), jnp.float32),
        "ln2_b": jnp.zeros((1, C), jnp.float32),
        "w_qkv": std * jax.random.normal(ks[0], (C, 3 * C), jnp.float32),
        "b_qkv": std * jax.random.normal(ks[1], (1, 3 * C), jnp.float32),
        "w_ao": std * jax.random.normal(ks[2], (C, C), jnp.float32),
        "b_ao": std * jax.random.normal(ks[3], (1, C), jnp.float32),
        "w_fc": std * jax.random.normal(ks[4], (n_splits, cs, 4 * cs), jnp.float32),
        "b_fc": std * jax.random.normal(ks[5], (n_splits, 1, 4 * cs), jnp.float32),
        "w_mo": std * jax.random.normal(ks[6], (n_splits, 4 * cs, cs), jnp.float32),
        "b_mo": std * jax.random.normal(ks[7], (n_splits, 1, cs), jnp.float32),
    }


if __name__ == "__main__":
    # config: n_embd=32, n_head=4, n_heads_in_split=2 -> n_splits=2, bias=True
    B, T, C = 2, 8, 32
    n_head, n_heads_in_split = 4, 2
    n_splits = n_head // n_heads_in_split
    E = 3  # number of incoming edges

    key = jax.random.PRNGKey(0)
    kx, ke, kp = jax.random.split(key, 3)
    x = jax.random.normal(kx, (B, T, C), jnp.float32)
    edges = 0.1 * jax.random.normal(ke, (E, B, T, C), jnp.float32)
    params = init_params(kp, C, n_splits)

    out = kraken_block(x, edges, params, n_head=n_head, n_splits=n_splits)
    out = jax.block_until_ready(out)

    ref = kraken_block_ref(x, edges, params, n_head=n_head, n_splits=n_splits)
    err = float(jnp.max(jnp.abs(out - ref)))
    assert out.shape == (B, T, C)
    # Tolerance loosened (vs f32 reference) for bf16 MXU operands + approx reciprocal.
    assert jnp.allclose(out, ref, atol=2e-2, rtol=2e-2), err

    print("KERNEL_OK")
</pallas_src>

<mosaic_0001>
module attributes {stable_mosaic.version = 11 : i64} {
  func.func @kraken_block_kernel(%arg0: i32, %arg1: memref<1x8x32xf32, #tpu.memory_space<vmem>>, %arg2: memref<3x1x8x32xf32, #tpu.memory_space<vmem>>, %arg3: memref<1x32xf32, #tpu.memory_space<vmem>>, %arg4: memref<1x32xf32, #tpu.memory_space<vmem>>, %arg5: memref<1x32xf32, #tpu.memory_space<vmem>>, %arg6: memref<1x32xf32, #tpu.memory_space<vmem>>, %arg7: memref<32x96xbf16, #tpu.memory_space<vmem>>, %arg8: memref<1x96xf32, #tpu.memory_space<vmem>>, %arg9: memref<32x32xbf16, #tpu.memory_space<vmem>>, %arg10: memref<1x32xf32, #tpu.memory_space<vmem>>, %arg11: memref<2x16x64xbf16, #tpu.memory_space<vmem>>, %arg12: memref<2x1x64xf32, #tpu.memory_space<vmem>>, %arg13: memref<2x64x16xbf16, #tpu.memory_space<vmem>>, %arg14: memref<2x1x16xf32, #tpu.memory_space<vmem>>, %arg15: memref<1x8x32xf32, #tpu.memory_space<vmem>>) attributes {dimension_semantics = [#tpu.dimension_semantics<parallel>], iteration_bounds = array<i64: 2>, scalar_prefetch = 0 : i64, scratch_operands = 0 : i64, tpu.core_type = #tpu.core_type<tc>, window_params = [{transform_indices = @transform_0, window_bounds = array<i64: 1, 8, 32>}, {transform_indices = @transform_1, window_bounds = array<i64: 3, 1, 8, 32>}, {pipeline_mode = #tpu.pipeline_mode<synchronous>, transform_indices = @transform_2, window_bounds = array<i64: 1, 32>}, {pipeline_mode = #tpu.pipeline_mode<synchronous>, transform_indices = @transform_3, window_bounds = array<i64: 1, 32>}, {pipeline_mode = #tpu.pipeline_mode<synchronous>, transform_indices = @transform_4, window_bounds = array<i64: 1, 32>}, {pipeline_mode = #tpu.pipeline_mode<synchronous>, transform_indices = @transform_5, window_bounds = array<i64: 1, 32>}, {pipeline_mode = #tpu.pipeline_mode<synchronous>, transform_indices = @transform_6, window_bounds = array<i64: 32, 96>}, {pipeline_mode = #tpu.pipeline_mode<synchronous>, transform_indices = @transform_7, window_bounds = array<i64: 1, 96>}, {pipeline_mode = #tpu.pipeline_mode<synchronous>, transform_indices = @transform_8, window_bounds = array<i64: 32, 32>}, {pipeline_mode = #tpu.pipeline_mode<synchronous>, transform_indices = @transform_9, window_bounds = array<i64: 1, 32>}, {pipeline_mode = #tpu.pipeline_mode<synchronous>, transform_indices = @transform_10, window_bounds = array<i64: 2, 16, 64>}, {pipeline_mode = #tpu.pipeline_mode<synchronous>, transform_indices = @transform_11, window_bounds = array<i64: 2, 1, 64>}, {pipeline_mode = #tpu.pipeline_mode<synchronous>, transform_indices = @transform_12, window_bounds = array<i64: 2, 64, 16>}, {pipeline_mode = #tpu.pipeline_mode<synchronous>, transform_indices = @transform_13, window_bounds = array<i64: 2, 1, 16>}, {transform_indices = @transform_14, window_bounds = array<i64: 1, 8, 32>}]} {
    %c0 = arith.constant 0 : index
    %c0_0 = arith.constant 0 : index
    %c0_1 = arith.constant 0 : index
    %0 = vector.load %arg1[%c0, %c0_0, %c0_1] : memref<1x8x32xf32, #tpu.memory_space<vmem>>, vector<1x8x32xf32>
    %1 = vector.shape_cast %0 : vector<1x8x32xf32> to vector<8x32xf32>
    %c0_2 = arith.constant 0 : index
    %c0_3 = arith.constant 0 : index
    %2 = vector.load %arg3[%c0_2, %c0_3] : memref<1x32xf32, #tpu.memory_space<vmem>>, vector<1x32xf32>
    %c0_4 = arith.constant 0 : index
    %c0_5 = arith.constant 0 : index
    %3 = vector.load %arg4[%c0_4, %c0_5] : memref<1x32xf32, #tpu.memory_space<vmem>>, vector<1x32xf32>
    %cst = arith.constant dense<0.000000e+00> : vector<8xf32>
    %4 = vector.multi_reduction <add>, %1, %cst [1] : vector<8x32xf32> to vector<8xf32>
    %5 = vector.shape_cast %4 : vector<8xf32> to vector<8x1xf32>
    %cst_6 = arith.constant 3.200000e+01 : f32
    %6 = vector.broadcast %cst_6 : f32 to vector<8x1xf32>
    %7 = arith.divf %5, %6 : vector<8x1xf32>
    %8 = vector.broadcast %7 : vector<8x1xf32> to vector<8x32xf32>
    %9 = arith.subf %1, %8 : vector<8x32xf32>
    %10 = arith.mulf %9, %9 : vector<8x32xf32>
    %cst_7 = arith.constant dense<0.000000e+00> : vector<8xf32>
    %11 = vector.multi_reduction <add>, %10, %cst_7 [1] : vector<8x32xf32> to vector<8xf32>
    %12 = vector.shape_cast %11 : vector<8xf32> to vector<8x1xf32>
    %cst_8 = arith.constant 3.200000e+01 : f32
    %13 = vector.broadcast %cst_8 : f32 to vector<8x1xf32>
    %14 = arith.divf %12, %13 : vector<8x1xf32>
    %15 = vector.broadcast %7 : vector<8x1xf32> to vector<8x32xf32>
    %16 = arith.subf %1, %15 : vector<8x32xf32>
    %cst_9 = arith.constant 9.99999974E-6 : f32
    %17 = vector.broadcast %cst_9 : f32 to vector<8x1xf32>
    %18 = arith.addf %14, %17 : vector<8x1xf32>
    %19 = math.rsqrt %18 : vector<8x1xf32>
    %20 = vector.broadcast %19 : vector<8x1xf32> to vector<8x32xf32>
    %21 = arith.mulf %16, %20 : vector<8x32xf32>
    %22 = vector.broadcast %2 : vector<1x32xf32> to vector<8x32xf32>
    %23 = arith.mulf %21, %22 : vector<8x32xf32>
    %24 = vector.broadcast %3 : vector<1x32xf32> to vector<8x32xf32>
    %25 = arith.addf %23, %24 : vector<8x32xf32>
    %26 = arith.truncf %25 : vector<8x32xf32> to vector<8x32xbf16>
    %c0_10 = arith.constant 0 : index
    %c0_11 = arith.constant 0 : index
    %27 = vector.load %arg7[%c0_10, %c0_11] : memref<32x96xbf16, #tpu.memory_space<vmem>>, vector<32x96xbf16>
    %cst_12 = arith.constant dense<0.000000e+00> : vector<8x96xf32>
    %28 = tpu.matmul %26, %27, %cst_12 {dimension_numbers = #tpu.dot_dimension_numbers<[1], [0], [0], [1], [0, 0, 1, 1], [], []>} : vector<8x32xbf16>, vector<32x96xbf16>, vector<8x96xf32> -> vector<8x96xf32>
    %c0_13 = arith.constant 0 : index
    %c0_14 = arith.constant 0 : index
    %29 = vector.load %arg8[%c0_13, %c0_14] : memref<1x96xf32, #tpu.memory_space<vmem>>, vector<1x96xf32>
    %30 = vector.broadcast %29 : vector<1x96xf32> to vector<8x96xf32>
    %31 = arith.addf %28, %30 : vector<8x96xf32>
    %32 = vector.extract_strided_slice %31 {offsets = [0, 0], sizes = [8, 32], strides = [1, 1]} : vector<8x96xf32> to vector<8x32xf32>
    %33 = vector.shape_cast %32 : vector<8x32xf32> to vector<8x4x8xf32>
    %34 = tpu.transpose %33, [1, 0, 2] : vector<8x4x8xf32> -> vector<4x8x8xf32>
    %35 = arith.truncf %34 : vector<4x8x8xf32> to vector<4x8x8xbf16>
    %36 = vector.extract_strided_slice %31 {offsets = [0, 32], sizes = [8, 32], strides = [1, 1]} : vector<8x96xf32> to vector<8x32xf32>
    %37 = vector.shape_cast %36 : vector<8x32xf32> to vector<8x4x8xf32>
    %38 = tpu.transpose %37, [1, 0, 2] : vector<8x4x8xf32> -> vector<4x8x8xf32>
    %39 = arith.truncf %38 : vector<4x8x8xf32> to vector<4x8x8xbf16>
    %40 = vector.extract_strided_slice %31 {offsets = [0, 64], sizes = [8, 32], strides = [1, 1]} : vector<8x96xf32> to vector<8x32xf32>
    %41 = vector.shape_cast %40 : vector<8x32xf32> to vector<8x4x8xf32>
    %42 = tpu.transpose %41, [1, 0, 2] : vector<8x4x8xf32> -> vector<4x8x8xf32>
    %43 = arith.truncf %42 : vector<4x8x8xf32> to vector<4x8x8xbf16>
    %cst_15 = arith.constant dense<0.000000e+00> : vector<4x8x8xf32>
    %44 = tpu.matmul %35, %39, %cst_15 {dimension_numbers = #tpu.dot_dimension_numbers<[2], [2], [1], [1], [0, 0, 0, 1, 1, 1], [0], [0]>} : vector<4x8x8xbf16>, vector<4x8x8xbf16>, vector<4x8x8xf32> -> vector<4x8x8xf32>
    %cst_16 = arith.constant 0.353553385 : f32
    %45 = vector.broadcast %cst_16 : f32 to vector<4x8x8xf32>
    %46 = arith.mulf %44, %45 : vector<4x8x8xf32>
    %47 = tpu.iota {dimensions = array<i32: 0>} : vector<8x8xi32>
    %48 = tpu.iota {dimensions = array<i32: 1>} : vector<8x8xi32>
    %49 = arith.cmpi sge, %47, %48 : vector<8x8xi32>
    %50 = vector.shape_cast %49 : vector<8x8xi1> to vector<1x8x8xi1>
    %cst_17 = arith.constant -1.000000e+30 : f32
    %51 = vector.shape_cast %50 : vector<1x8x8xi1> to vector<1x8x8xi1>
    %52 = vector.broadcast %51 : vector<1x8x8xi1> to vector<4x8x8xi1>
    %53 = vector.broadcast %cst_17 : f32 to vector<4x8x8xf32>
    %54 = arith.select %52, %46, %53 : vector<4x8x8xi1>, vector<4x8x8xf32>
    %cst_18 = arith.constant dense<0xFF800000> : vector<4x8xf32>
    %55 = vector.multi_reduction <maximumf>, %54, %cst_18 [2] : vector<4x8x8xf32> to vector<4x8xf32>
    %56 = vector.shape_cast %55 : vector<4x8xf32> to vector<4x8x1xf32>
    %57 = vector.broadcast %56 : vector<4x8x1xf32> to vector<4x8x8xf32>
    %58 = arith.subf %54, %57 : vector<4x8x8xf32>
    %59 = math.exp %58 : vector<4x8x8xf32>
    %cst_19 = arith.constant dense<0.000000e+00> : vector<4x8xf32>
    %60 = vector.multi_reduction <add>, %59, %cst_19 [2] : vector<4x8x8xf32> to vector<4x8xf32>
    %61 = vector.shape_cast %60 : vector<4x8xf32> to vector<4x8x1xf32>
    %62 = tpu.reciprocal %61 {approx = true} : vector<4x8x1xf32> -> vector<4x8x1xf32>
    %63 = vector.broadcast %62 : vector<4x8x1xf32> to vector<4x8x8xf32>
    %64 = arith.mulf %59, %63 : vector<4x8x8xf32>
    %65 = arith.truncf %64 : vector<4x8x8xf32> to vector<4x8x8xbf16>
    %cst_20 = arith.constant dense<0.000000e+00> : vector<4x8x8xf32>
    %66 = tpu.matmul %65, %43, %cst_20 {dimension_numbers = #tpu.dot_dimension_numbers<[2], [1], [1], [2], [0, 0, 0, 1, 1, 2], [0], [0]>} : vector<4x8x8xbf16>, vector<4x8x8xbf16>, vector<4x8x8xf32> -> vector<4x8x8xf32>
    %67 = tpu.transpose %66, [1, 0, 2] : vector<4x8x8xf32> -> vector<8x4x8xf32>
    %68 = vector.shape_cast %67 : vector<8x4x8xf32> to vector<8x32xf32>
    %69 = arith.truncf %68 : vector<8x32xf32> to vector<8x32xbf16>
    %c0_21 = arith.constant 0 : index
    %c0_22 = arith.constant 0 : index
    %70 = vector.load %arg9[%c0_21, %c0_22] : memref<32x32xbf16, #tpu.memory_space<vmem>>, vector<32x32xbf16>
    %cst_23 = arith.constant dense<0.000000e+00> : vector<8x32xf32>
    %71 = tpu.matmul %69, %70, %cst_23 {dimension_numbers = #tpu.dot_dimension_numbers<[1], [0], [0], [1], [0, 0, 1, 1], [], []>} : vector<8x32xbf16>, vector<32x32xbf16>, vector<8x32xf32> -> vector<8x32xf32>
    %c0_24 = arith.constant 0 : index
    %c0_25 = arith.constant 0 : index
    %72 = vector.load %arg10[%c0_24, %c0_25] : memref<1x32xf32, #tpu.memory_space<vmem>>, vector<1x32xf32>
    %73 = vector.broadcast %72 : vector<1x32xf32> to vector<8x32xf32>
    %74 = arith.addf %71, %73 : vector<8x32xf32>
    %75 = arith.addf %1, %74 : vector<8x32xf32>
    %c0_26 = arith.constant 0 : index
    %c0_27 = arith.constant 0 : index
    %c0_28 = arith.constant 0 : index
    %c0_29 = arith.constant 0 : index
    %76 = vector.load %arg2[%c0_26, %c0_27, %c0_28, %c0_29] : memref<3x1x8x32xf32, #tpu.memory_space<vmem>>, vector<3x1x8x32xf32>
    %77 = vector.shape_cast %76 : vector<3x1x8x32xf32> to vector<3x8x32xf32>
    %cst_30 = arith.constant dense<0.000000e+00> : vector<8x32xf32>
    %78 = vector.multi_reduction <add>, %77, %cst_30 [0] : vector<3x8x32xf32> to vector<8x32xf32>
    %79 = arith.addf %75, %78 : vector<8x32xf32>
    %c0_31 = arith.constant 0 : index
    %c0_32 = arith.constant 0 : index
    %80 = vector.load %arg5[%c0_31, %c0_32] : memref<1x32xf32, #tpu.memory_space<vmem>>, vector<1x32xf32>
    %c0_33 = arith.constant 0 : index
    %c0_34 = arith.constant 0 : index
    %81 = vector.load %arg6[%c0_33, %c0_34] : memref<1x32xf32, #tpu.memory_space<vmem>>, vector<1x32xf32>
    %cst_35 = arith.constant dense<0.000000e+00> : vector<8xf32>
    %82 = vector.multi_reduction <add>, %79, %cst_35 [1] : vector<8x32xf32> to vector<8xf32>
    %83 = vector.shape_cast %82 : vector<8xf32> to vector<8x1xf32>
    %cst_36 = arith.constant 3.200000e+01 : f32
    %84 = vector.broadcast %cst_36 : f32 to vector<8x1xf32>
    %85 = arith.divf %83, %84 : vector<8x1xf32>
    %86 = vector.broadcast %85 : vector<8x1xf32> to vector<8x32xf32>
    %87 = arith.subf %79, %86 : vector<8x32xf32>
    %88 = arith.mulf %87, %87 : vector<8x32xf32>
    %cst_37 = arith.constant dense<0.000000e+00> : vector<8xf32>
    %89 = vector.multi_reduction <add>, %88, %cst_37 [1] : vector<8x32xf32> to vector<8xf32>
    %90 = vector.shape_cast %89 : vector<8xf32> to vector<8x1xf32>
    %cst_38 = arith.constant 3.200000e+01 : f32
    %91 = vector.broadcast %cst_38 : f32 to vector<8x1xf32>
    %92 = arith.divf %90, %91 : vector<8x1xf32>
    %93 = vector.broadcast %85 : vector<8x1xf32> to vector<8x32xf32>
    %94 = arith.subf %79, %93 : vector<8x32xf32>
    %cst_39 = arith.constant 9.99999974E-6 : f32
    %95 = vector.broadcast %cst_39 : f32 to vector<8x1xf32>
    %96 = arith.addf %92, %95 : vector<8x1xf32>
    %97 = math.rsqrt %96 : vector<8x1xf32>
    %98 = vector.broadcast %97 : vector<8x1xf32> to vector<8x32xf32>
    %99 = arith.mulf %94, %98 : vector<8x32xf32>
    %100 = vector.broadcast %80 : vector<1x32xf32> to vector<8x32xf32>
    %101 = arith.mulf %99, %100 : vector<8x32xf32>
    %102 = vector.broadcast %81 : vector<1x32xf32> to vector<8x32xf32>
    %103 = arith.addf %101, %102 : vector<8x32xf32>
    %104 = vector.shape_cast %103 : vector<8x32xf32> to vector<8x2x16xf32>
    %105 = tpu.transpose %104, [1, 0, 2] : vector<8x2x16xf32> -> vector<2x8x16xf32>
    %106 = arith.truncf %105 : vector<2x8x16xf32> to vector<2x8x16xbf16>
    %c0_40 = arith.constant 0 : index
    %c0_41 = arith.constant 0 : index
    %c0_42 = arith.constant 0 : index
    %107 = vector.load %arg11[%c0_40, %c0_41, %c0_42] : memref<2x16x64xbf16, #tpu.memory_space<vmem>>, vector<2x16x64xbf16>
    %cst_43 = arith.constant dense<0.000000e+00> : vector<2x8x64xf32>
    %108 = tpu.matmul %106, %107, %cst_43 {dimension_numbers = #tpu.dot_dimension_numbers<[2], [1], [1], [2], [0, 0, 0, 1, 1, 2], [0], [0]>} : vector<2x8x16xbf16>, vector<2x16x64xbf16>, vector<2x8x64xf32> -> vector<2x8x64xf32>
    %c0_44 = arith.constant 0 : index
    %c0_45 = arith.constant 0 : index
    %c0_46 = arith.constant 0 : index
    %109 = vector.load %arg12[%c0_44, %c0_45, %c0_46] : memref<2x1x64xf32, #tpu.memory_space<vmem>>, vector<2x1x64xf32>
    %110 = vector.broadcast %109 : vector<2x1x64xf32> to vector<2x8x64xf32>
    %111 = arith.addf %108, %110 : vector<2x8x64xf32>
    %112 = arith.mulf %111, %111 : vector<2x8x64xf32>
    %113 = arith.mulf %111, %112 : vector<2x8x64xf32>
    %cst_47 = arith.constant 4.471500e-02 : f32
    %114 = vector.broadcast %cst_47 : f32 to vector<2x8x64xf32>
    %115 = arith.mulf %114, %113 : vector<2x8x64xf32>
    %116 = arith.addf %111, %115 : vector<2x8x64xf32>
    %cst_48 = arith.constant 0.797884583 : f32
    %117 = vector.broadcast %cst_48 : f32 to vector<2x8x64xf32>
    %118 = arith.mulf %117, %116 : vector<2x8x64xf32>
    %119 = math.tanh %118 : vector<2x8x64xf32>
    %cst_49 = arith.constant 1.000000e+00 : f32
    %120 = vector.broadcast %cst_49 : f32 to vector<2x8x64xf32>
    %121 = arith.addf %120, %119 : vector<2x8x64xf32>
    %cst_50 = arith.constant 5.000000e-01 : f32
    %122 = vector.broadcast %cst_50 : f32 to vector<2x8x64xf32>
    %123 = arith.mulf %122, %121 : vector<2x8x64xf32>
    %124 = arith.mulf %111, %123 : vector<2x8x64xf32>
    %125 = arith.truncf %124 : vector<2x8x64xf32> to vector<2x8x64xbf16>
    %c0_51 = arith.constant 0 : index
    %c0_52 = arith.constant 0 : index
    %c0_53 = arith.constant 0 : index
    %126 = vector.load %arg13[%c0_51, %c0_52, %c0_53] : memref<2x64x16xbf16, #tpu.memory_space<vmem>>, vector<2x64x16xbf16>
    %cst_54 = arith.constant dense<0.000000e+00> : vector<2x8x16xf32>
    %127 = tpu.matmul %125, %126, %cst_54 {dimension_numbers = #tpu.dot_dimension_numbers<[2], [1], [1], [2], [0, 0, 0, 1, 1, 2], [0], [0]>} : vector<2x8x64xbf16>, vector<2x64x16xbf16>, vector<2x8x16xf32> -> vector<2x8x16xf32>
    %c0_55 = arith.constant 0 : index
    %c0_56 = arith.constant 0 : index
    %c0_57 = arith.constant 0 : index
    %128 = vector.load %arg14[%c0_55, %c0_56, %c0_57] : memref<2x1x16xf32, #tpu.memory_space<vmem>>, vector<2x1x16xf32>
    %129 = vector.broadcast %128 : vector<2x1x16xf32> to vector<2x8x16xf32>
    %130 = arith.addf %127, %129 : vector<2x8x16xf32>
    %131 = tpu.transpose %130, [1, 0, 2] : vector<2x8x16xf32> -> vector<8x2x16xf32>
    %132 = vector.shape_cast %131 : vector<8x2x16xf32> to vector<8x32xf32>
    %133 = arith.addf %75, %132 : vector<8x32xf32>
    %c0_58 = arith.constant 0 : index
    %c0_59 = arith.constant 0 : index
    %c0_60 = arith.constant 0 : index
    %134 = vector.load %arg15[%c0_58, %c0_59, %c0_60] : memref<1x8x32xf32, #tpu.memory_space<vmem>>, vector<1x8x32xf32>
    %135 = vector.shape_cast %134 : vector<1x8x32xf32> to vector<8x32xf32>
    %136 = vector.shape_cast %133 : vector<8x32xf32> to vector<1x8x32xf32>
    tpu.vector_store %arg15[%c0_58, %c0_59, %c0_60], %136 {strides = array<i32>} : memref<1x8x32xf32, #tpu.memory_space<vmem>>, vector<1x8x32xf32>,
    return
  }
  func.func @transform_0(%arg0: i32) -> (i32, i32, i32) {
    %c0_i32 = arith.constant 0 : i32
    %c0_i32_0 = arith.constant 0 : i32
    %c0_i32_1 = arith.constant 0 : i32
    return %arg0, %c0_i32, %c0_i32_0 : i32, i32, i32
  }
  func.func @transform_1(%arg0: i32) -> (i32, i32, i32, i32) {
    %c0_i32 = arith.constant 0 : i32
    %c0_i32_0 = arith.constant 0 : i32
    %c0_i32_1 = arith.constant 0 : i32
    %c0_i32_2 = arith.constant 0 : i32
    return %c0_i32, %arg0, %c0_i32_0, %c0_i32_1 : i32, i32, i32, i32
  }
  func.func @transform_2(%arg0: i32) -> (i32, i32) {
    %c0_i32 = arith.constant 0 : i32
    %c0_i32_0 = arith.constant 0 : i32
    %c0_i32_1 = arith.constant 0 : i32
    return %c0_i32, %c0_i32_0 : i32, i32
  }
  func.func @transform_3(%arg0: i32) -> (i32, i32) {
    %c0_i32 = arith.constant 0 : i32
    %c0_i32_0 = arith.constant 0 : i32
    %c0_i32_1 = arith.constant 0 : i32
    return %c0_i32, %c0_i32_0 : i32, i32
  }
  func.func @transform_4(%arg0: i32) -> (i32, i32) {
    %c0_i32 = arith.constant 0 : i32
    %c0_i32_0 = arith.constant 0 : i32
    %c0_i32_1 = arith.constant 0 : i32
    return %c0_i32, %c0_i32_0 : i32, i32
  }
  func.func @transform_5(%arg0: i32) -> (i32, i32) {
    %c0_i32 = arith.constant 0 : i32
    %c0_i32_0 = arith.constant 0 : i32
    %c0_i32_1 = arith.constant 0 : i32
    return %c0_i32, %c0_i32_0 : i32, i32
  }
  func.func @transform_6(%arg0: i32) -> (i32, i32) {
    %c0_i32 = arith.constant 0 : i32
    %c0_i32_0 = arith.constant 0 : i32
    %c0_i32_1 = arith.constant 0 : i32
    return %c0_i32, %c0_i32_0 : i32, i32
  }
  func.func @transform_7(%arg0: i32) -> (i32, i32) {
    %c0_i32 = arith.constant 0 : i32
    %c0_i32_0 = arith.constant 0 : i32
    %c0_i32_1 = arith.constant 0 : i32
    return %c0_i32, %c0_i32_0 : i32, i32
  }
  func.func @transform_8(%arg0: i32) -> (i32, i32) {
    %c0_i32 = arith.constant 0 : i32
    %c0_i32_0 = arith.constant 0 : i32
    %c0_i32_1 = arith.constant 0 : i32
    return %c0_i32, %c0_i32_0 : i32, i32
  }
  func.func @transform_9(%arg0: i32) -> (i32, i32) {
    %c0_i32 = arith.constant 0 : i32
    %c0_i32_0 = arith.constant 0 : i32
    %c0_i32_1 = arith.constant 0 : i32
    return %c0_i32, %c0_i32_0 : i32, i32
  }
  func.func @transform_10(%arg0: i32) -> (i32, i32, i32) {
    %c0_i32 = arith.constant 0 : i32
    %c0_i32_0 = arith.constant 0 : i32
    %c0_i32_1 = arith.constant 0 : i32
    %c0_i32_2 = arith.constant 0 : i32
    return %c0_i32, %c0_i32_0, %c0_i32_1 : i32, i32, i32
  }
  func.func @transform_11(%arg0: i32) -> (i32, i32, i32) {
    %c0_i32 = arith.constant 0 : i32
    %c0_i32_0 = arith.constant 0 : i32
    %c0_i32_1 = arith.constant 0 : i32
    %c0_i32_2 = arith.constant 0 : i32
    return %c0_i32, %c0_i32_0, %c0_i32_1 : i32, i32, i32
  }
  func.func @transform_12(%arg0: i32) -> (i32, i32, i32) {
    %c0_i32 = arith.constant 0 : i32
    %c0_i32_0 = arith.constant 0 : i32
    %c0_i32_1 = arith.constant 0 : i32
    %c0_i32_2 = arith.constant 0 : i32
    return %c0_i32, %c0_i32_0, %c0_i32_1 : i32, i32, i32
  }
  func.func @transform_13(%arg0: i32) -> (i32, i32, i32) {
    %c0_i32 = arith.constant 0 : i32
    %c0_i32_0 = arith.constant 0 : i32
    %c0_i32_1 = arith.constant 0 : i32
    %c0_i32_2 = arith.constant 0 : i32
    return %c0_i32, %c0_i32_0, %c0_i32_1 : i32, i32, i32
  }
  func.func @transform_14(%arg0: i32) -> (i32, i32, i32) {
    %c0_i32 = arith.constant 0 : i32
    %c0_i32_0 = arith.constant 0 : i32
    %c0_i32_1 = arith.constant 0 : i32
    return %arg0, %c0_i32, %c0_i32_0 : i32, i32, i32
  }
}

</mosaic_0001>

<llo_original>
// kernel: tpu_custom_call.1
$region0: #{tpu_custom_call.1}
  #allocation0 [shape = 'u32[]', space=smem, size = 0x4, offset = 0x4, fixed_abs, tag = 'smem constant byte address 0x4 - core index']
  #allocation1 [shape = 'u32[144,128]{1,0:T(1,128)}', space=vmem, size = 0x12000, scoped, tag = 'internal scratch']
  %s0 = inlined_call_operand.vmem [shape: f32[2,8,32], index: 0, kind: input, shape index: {}]
  %s1 = inlined_call_operand.vmem [shape: f32[3,2,8,32], index: 1, kind: input, shape index: {}]
  %s2 = inlined_call_operand.hbm [shape: f32[1,32], index: 2, kind: input, shape index: {}]
  %s3 = inlined_call_operand.hbm [shape: f32[1,32], index: 3, kind: input, shape index: {}]
  %s4 = inlined_call_operand.hbm [shape: f32[1,32], index: 4, kind: input, shape index: {}]
  %s5 = inlined_call_operand.hbm [shape: f32[1,32], index: 5, kind: input, shape index: {}]
  %s6 = inlined_call_operand.vmem [shape: bf16[32,96], index: 6, kind: input, shape index: {}]
  %s7 = inlined_call_operand.hbm [shape: f32[1,96], index: 7, kind: input, shape index: {}]
  %s8 = inlined_call_operand.hbm [shape: bf16[32,32], index: 8, kind: input, shape index: {}]
  %s9 = inlined_call_operand.hbm [shape: f32[1,32], index: 9, kind: input, shape index: {}]
  %s10 = inlined_call_operand.vmem [shape: bf16[2,16,64], index: 10, kind: input, shape index: {}]
  %s11 = inlined_call_operand.vmem [shape: f32[2,1,64], index: 11, kind: input, shape index: {}]
  %s12 = inlined_call_operand.vmem [shape: bf16[2,64,16], index: 12, kind: input, shape index: {}]
  %s13 = inlined_call_operand.vmem [shape: f32[2,1,16], index: 13, kind: input, shape index: {}]
  %s14 = inlined_call_operand.hbm [shape: f32[2,8,32], index: 14, kind: output, shape index: {}]
  %s15 = sld [smem:[#allocation0]]
  $region155: #{tpu_custom_call.1} parent=0
    _
  %s17 = ssub.s32 1, %s15
  %s18 = scalar_select 0, %s17, %s15
  $region1: #{tpu_custom_call.1} parent=0
    #allocation2 [shape = 'u8[24576]{0}', space=vmem, size = 0x6000, scoped, tag = 'input window, operand 1']
    #allocation3 [shape = 'u8[512]{0}', space=vmem, size = 0x400, scoped, tag = 'input window, operand 2, single buffered']
    #allocation4 [shape = 's32[2]{0}', space=sflag, size = 0x8, scoped, tag = 'scoped memory for tpu_custom_call.1']
    #allocation5 [shape = 's32[2]{0}', space=sflag, size = 0x8, scoped, tag = 'scoped memory for tpu_custom_call.1']
    #allocation6 [shape = 'u8[512]{0}', space=vmem, size = 0x400, scoped, tag = 'input window, operand 3, single buffered']
    #allocation7 [shape = 's32[1]{0}', space=sflag, size = 0x4, scoped, tag = 'scoped memory for tpu_custom_call.1']
    #allocation8 [shape = 'u8[512]{0}', space=vmem, size = 0x400, scoped, tag = 'input window, operand 4, single buffered']
    #allocation9 [shape = 'u8[512]{0}', space=vmem, size = 0x400, scoped, tag = 'input window, operand 5, single buffered']
    #allocation10 [shape = 's32[1]{0}', space=sflag, size = 0x4, scoped, tag = 'scoped memory for tpu_custom_call.1']
    #allocation11 [shape = 'u8[512]{0}', space=vmem, size = 0x400, scoped, tag = 'input window, operand 7, single buffered']
    #allocation12 [shape = 'u8[8192]{0}', space=vmem, size = 0x2000, scoped, tag = 'input window, operand 8, single buffered']
    #allocation13 [shape = 's32[1]{0}', space=sflag, size = 0x4, scoped, tag = 'scoped memory for tpu_custom_call.1']
    #allocation14 [shape = 'u8[512]{0}', space=vmem, size = 0x400, scoped, tag = 'input window, operand 9, single buffered']
    #allocation15 [shape = 'u8[8192]{0}', space=vmem, size = 0x2000, scoped, tag = 'output window, operand 0']
    %19 = vsyncpa [#allocation4], 0
    %20 = vsyncpa [#allocation7], 0
    %21 = vsyncpa [#allocation10], 0
    %22 = vsyncpa [#allocation13], 0
    %23 = vsyncpa [#allocation5], 0
    %s24 = scalar_lea.sflag [#allocation5], 1
    %25 = vsyncpa %s24, 0
    loop: start=0, step=1, limit=4
    $region2: #{tpu_custom_call.1} parent=1 // loop_pre_header
      _
    $region3: #{tpu_custom_call.1} parent=1 // loop_header
      %s27 = sphi 0, %s31
      %p28 = scmp.ge.s32.totalorder %s27, 4
      %s37 = sphi 0, %s39
      %s40 = sphi 0, %s37
      %s41 = sphi 0, %s40
      %s57 = sphi 0, %s41
      %s63 = sphi 0, %s65
      %s66 = sphi 0, %s63
      %s67 = sphi 0, %s66
      %s83 = sphi 0, %s67
      %s87 = sphi 0, %s87
      %s89 = sphi 0, %s87
      %s90 = sphi 0, %s89
      %s104 = sphi 0, %s90
      %s108 = sphi 0, %s108
      %s110 = sphi 0, %s108
      %s111 = sphi 0, %s110
      %s125 = sphi 0, %s111
      %s129 = sphi 0, %s129
      %s131 = sphi 0, %s129
      %s132 = sphi 0, %s131
      %s146 = sphi 0, %s132
      %s150 = sphi 0, %s150
      %s152 = sphi 0, %s150
      %s153 = sphi 0, %s152
      %s167 = sphi 0, %s153
      %s171 = sphi 0, %s171
      %s173 = sphi 0, %s171
      %s174 = sphi 0, %s173
      %s188 = sphi 0, %s174
      %s192 = sphi 0, %s192
      %s194 = sphi 0, %s192
      %s195 = sphi 0, %s194
      %s209 = sphi 0, %s195
      %s213 = sphi 0, %s213
      %s215 = sphi 0, %s213
      %s216 = sphi 0, %s215
      %s230 = sphi 0, %s216
      %s234 = sphi 0, %s234
      %s236 = sphi 0, %s234
      %s237 = sphi 0, %s236
      %s251 = sphi 0, %s237
      %s255 = sphi 0, %s255
      %s257 = sphi 0, %s255
      %s258 = sphi 0, %s257
      %s272 = sphi 0, %s258
      %s276 = sphi 0, %s276
      %s278 = sphi 0, %s276
      %s279 = sphi 0, %s278
      %s293 = sphi 0, %s279
      %s297 = sphi 0, %s297
      %s299 = sphi 0, %s297
      %s300 = sphi 0, %s299
      %s314 = sphi 0, %s300
      %s318 = sphi 0, %s318
      %s320 = sphi 0, %s318
      %s321 = sphi 0, %s320
      %s335 = sphi 0, %s321
      %s341 = sphi 0, %s343
      %s344 = sphi 0, %s341
      %s345 = sphi 0, %s344
      %s361 = sphi 0, %s345
    $region4: #{tpu_custom_call.1} parent=1 // loop_header_branch
      %30 = sbr.rel (%p28) target = $region8
    $region5: #{tpu_custom_call.1} parent=1 // loop_body
      %s32 = ssub.s32 %s27, 1
      %s33 = ssub.s32 %s27, 2
      %s34 = sadd.s32 %s27, 1
      %s35 = ssub.s32 %s27, %s34
      %p36 = scmp.eq.s32.totalorder %s35, 0
      %s38 = sadd.s32 %s37, 1
      %s39 = scalar_select %p36, %s37, %s38
      %p42 = pneg %p36
      %p43 = scmp.eq.s32.totalorder %s27, 1
      %p44 = por %p42, %p43
      %p45 = scmp.ne.s32.totalorder %s37, %s40
      %p46 = scmp.eq.s32.totalorder %s27, 0
      %p47 = por %p45, %p46
      %p48 = scmp.ne.s32.totalorder %s37, %s40
      %p49 = scmp.eq.s32.totalorder %s32, 1
      %p50 = por %p48, %p49
      %p51 = scmp.ne.s32.totalorder %s40, %s41
      %p52 = scmp.eq.s32.totalorder %s32, 0
      %p53 = por %p51, %p52
      %p54 = scmp.ne.s32.totalorder %s40, %s41
      %p55 = scmp.eq.s32.totalorder %s33, 1
      %p56 = por %p54, %p55
      %p58 = scmp.ne.s32.totalorder %s41, %s57
      %p59 = scmp.eq.s32.totalorder %s33, 0
      %p60 = por %p58, %p59
      %s61 = ssub.s32 %s27, %s34
      %p62 = scmp.eq.s32.totalorder %s61, 0
      %s64 = sadd.s32 %s63, 1
      %s65 = scalar_select %p62, %s63, %s64
      %p68 = pneg %p62
      %p69 = scmp.eq.s32.totalorder %s27, 1
      %p70 = por %p68, %p69
      %p71 = scmp.ne.s32.totalorder %s63, %s66
      %p72 = scmp.eq.s32.totalorder %s27, 0
      %p73 = por %p71, %p72
      %p74 = scmp.ne.s32.totalorder %s63, %s66
      %p75 = scmp.eq.s32.totalorder %s32, 1
      %p76 = por %p74, %p75
      %p77 = scmp.ne.s32.totalorder %s66, %s67
      %p78 = scmp.eq.s32.totalorder %s32, 0
      %p79 = por %p77, %p78
      %p80 = scmp.ne.s32.totalorder %s66, %s67
      %p81 = scmp.eq.s32.totalorder %s33, 1
      %p82 = por %p80, %p81
      %p84 = scmp.ne.s32.totalorder %s67, %s83
      %p85 = scmp.eq.s32.totalorder %s33, 0
      %p86 = por %p84, %p85
      %s88 = sadd.s32 %s87, 1
      %p91 = scmp.eq.s32.totalorder %s27, 1
      %p92 = scmp.ne.s32.totalorder %s87, %s89
      %p93 = scmp.eq.s32.totalorder %s27, 0
      %p94 = por %p92, %p93
      %p95 = scmp.ne.s32.totalorder %s87, %s89
      %p96 = scmp.eq.s32.totalorder %s32, 1
      %p97 = por %p95, %p96
      %p98 = scmp.ne.s32.totalorder %s89, %s90
      %p99 = scmp.eq.s32.totalorder %s32, 0
      %p100 = por %p98, %p99
      %p101 = scmp.ne.s32.totalorder %s89, %s90
      %p102 = scmp.eq.s32.totalorder %s33, 1
      %p103 = por %p101, %p102
      %p105 = scmp.ne.s32.totalorder %s90, %s104
      %p106 = scmp.eq.s32.totalorder %s33, 0
      %p107 = por %p105, %p106
      %s109 = sadd.s32 %s108, 1
      %p112 = scmp.eq.s32.totalorder %s27, 1
      %p113 = scmp.ne.s32.totalorder %s108, %s110
      %p114 = scmp.eq.s32.totalorder %s27, 0
      %p115 = por %p113, %p114
      %p116 = scmp.ne.s32.totalorder %s108, %s110
      %p117 = scmp.eq.s32.totalorder %s32, 1
      %p118 = por %p116, %p117
      %p119 = scmp.ne.s32.totalorder %s110, %s111
      %p120 = scmp.eq.s32.totalorder %s32, 0
      %p121 = por %p119, %p120
      %p122 = scmp.ne.s32.totalorder %s110, %s111
      %p123 = scmp.eq.s32.totalorder %s33, 1
      %p124 = por %p122, %p123
      %p126 = scmp.ne.s32.totalorder %s111, %s125
      %p127 = scmp.eq.s32.totalorder %s33, 0
      %p128 = por %p126, %p127
      %s130 = sadd.s32 %s129, 1
      %p133 = scmp.eq.s32.totalorder %s27, 1
      %p134 = scmp.ne.s32.totalorder %s129, %s131
      %p135 = scmp.eq.s32.totalorder %s27, 0
      %p136 = por %p134, %p135
      %p137 = scmp.ne.s32.totalorder %s129, %s131
      %p138 = scmp.eq.s32.totalorder %s32, 1
      %p139 = por %p137, %p138
      %p140 = scmp.ne.s32.totalorder %s131, %s132
      %p141 = scmp.eq.s32.totalorder %s32, 0
      %p142 = por %p140, %p141
      %p143 = scmp.ne.s32.totalorder %s131, %s132
      %p144 = scmp.eq.s32.totalorder %s33, 1
      %p145 = por %p143, %p144
      %p147 = scmp.ne.s32.totalorder %s132, %s146
      %p148 = scmp.eq.s32.totalorder %s33, 0
      %p149 = por %p147, %p148
      %s151 = sadd.s32 %s150, 1
      %p154 = scmp.eq.s32.totalorder %s27, 1
      %p155 = scmp.ne.s32.totalorder %s150, %s152
      %p156 = scmp.eq.s32.totalorder %s27, 0
      %p157 = por %p155, %p156
      %p158 = scmp.ne.s32.totalorder %s150, %s152
      %p159 = scmp.eq.s32.totalorder %s32, 1
      %p160 = por %p158, %p159
      %p161 = scmp.ne.s32.totalorder %s152, %s153
      %p162 = scmp.eq.s32.totalorder %s32, 0
      %p163 = por %p161, %p162
      %p164 = scmp.ne.s32.totalorder %s152, %s153
      %p165 = scmp.eq.s32.totalorder %s33, 1
      %p166 = por %p164, %p165
      %p168 = scmp.ne.s32.totalorder %s153, %s167
      %p169 = scmp.eq.s32.totalorder %s33, 0
      %p170 = por %p168, %p169
      %s172 = sadd.s32 %s171, 1
      %p175 = scmp.eq.s32.totalorder %s27, 1
      %p176 = scmp.ne.s32.totalorder %s171, %s173
      %p177 = scmp.eq.s32.totalorder %s27, 0
      %p178 = por %p176, %p177
      %p179 = scmp.ne.s32.totalorder %s171, %s173
      %p180 = scmp.eq.s32.totalorder %s32, 1
      %p181 = por %p179, %p180
      %p182 = scmp.ne.s32.totalorder %s173, %s174
      %p183 = scmp.eq.s32.totalorder %s32, 0
      %p184 = por %p182, %p183
      %p185 = scmp.ne.s32.totalorder %s173, %s174
      %p186 = scmp.eq.s32.totalorder %s33, 1
      %p187 = por %p185, %p186
      %p189 = scmp.ne.s32.totalorder %s174, %s188
      %p190 = scmp.eq.s32.totalorder %s33, 0
      %p191 = por %p189, %p190
      %s193 = sadd.s32 %s192, 1
      %p196 = scmp.eq.s32.totalorder %s27, 1
      %p197 = scmp.ne.s32.totalorder %s192, %s194
      %p198 = scmp.eq.s32.totalorder %s27, 0
      %p199 = por %p197, %p198
      %p200 = scmp.ne.s32.totalorder %s192, %s194
      %p201 = scmp.eq.s32.totalorder %s32, 1
      %p202 = por %p200, %p201
      %p203 = scmp.ne.s32.totalorder %s194, %s195
      %p204 = scmp.eq.s32.totalorder %s32, 0
      %p205 = por %p203, %p204
      %p206 = scmp.ne.s32.totalorder %s194, %s195
      %p207 = scmp.eq.s32.totalorder %s33, 1
      %p208 = por %p206, %p207
      %p210 = scmp.ne.s32.totalorder %s195, %s209
      %p211 = scmp.eq.s32.totalorder %s33, 0
      %p212 = por %p210, %p211
      %s214 = sadd.s32 %s213, 1
      %p217 = scmp.eq.s32.totalorder %s27, 1
      %p218 = scmp.ne.s32.totalorder %s213, %s215
      %p219 = scmp.eq.s32.totalorder %s27, 0
      %p220 = por %p218, %p219
      %p221 = scmp.ne.s32.totalorder %s213, %s215
      %p222 = scmp.eq.s32.totalorder %s32, 1
      %p223 = por %p221, %p222
      %p224 = scmp.ne.s32.totalorder %s215, %s216
      %p225 = scmp.eq.s32.totalorder %s32, 0
      %p226 = por %p224, %p225
      %p227 = scmp.ne.s32.totalorder %s215, %s216
      %p228 = scmp.eq.s32.totalorder %s33, 1
      %p229 = por %p227, %p228
      %p231 = scmp.ne.s32.totalorder %s216, %s230
      %p232 = scmp.eq.s32.totalorder %s33, 0
      %p233 = por %p231, %p232
      %s235 = sadd.s32 %s234, 1
      %p238 = scmp.eq.s32.totalorder %s27, 1
      %p239 = scmp.ne.s32.totalorder %s234, %s236
      %p240 = scmp.eq.s32.totalorder %s27, 0
      %p241 = por %p239, %p240
      %p242 = scmp.ne.s32.totalorder %s234, %s236
      %p243 = scmp.eq.s32.totalorder %s32, 1
      %p244 = por %p242, %p243
      %p245 = scmp.ne.s32.totalorder %s236, %s237
      %p246 = scmp.eq.s32.totalorder %s32, 0
      %p247 = por %p245, %p246
      %p248 = scmp.ne.s32.totalorder %s236, %s237
      %p249 = scmp.eq.s32.totalorder %s33, 1
      %p250 = por %p248, %p249
      %p252 = scmp.ne.s32.totalorder %s237, %s251
      %p253 = scmp.eq.s32.totalorder %s33, 0
      %p254 = por %p252, %p253
      %s256 = sadd.s32 %s255, 1
      %p259 = scmp.eq.s32.totalorder %s27, 1
      %p260 = scmp.ne.s32.totalorder %s255, %s257
      %p261 = scmp.eq.s32.totalorder %s27, 0
      %p262 = por %p260, %p261
      %p263 = scmp.ne.s32.totalorder %s255, %s257
      %p264 = scmp.eq.s32.totalorder %s32, 1
      %p265 = por %p263, %p264
      %p266 = scmp.ne.s32.totalorder %s257, %s258
      %p267 = scmp.eq.s32.totalorder %s32, 0
      %p268 = por %p266, %p267
      %p269 = scmp.ne.s32.totalorder %s257, %s258
      %p270 = scmp.eq.s32.totalorder %s33, 1
      %p271 = por %p269, %p270
      %p273 = scmp.ne.s32.totalorder %s258, %s272
      %p274 = scmp.eq.s32.totalorder %s33, 0
      %p275 = por %p273, %p274
      %s277 = sadd.s32 %s276, 1
      %p280 = scmp.eq.s32.totalorder %s27, 1
      %p281 = scmp.ne.s32.totalorder %s276, %s278
      %p282 = scmp.eq.s32.totalorder %s27, 0
      %p283 = por %p281, %p282
      %p284 = scmp.ne.s32.totalorder %s276, %s278
      %p285 = scmp.eq.s32.totalorder %s32, 1
      %p286 = por %p284, %p285
      %p287 = scmp.ne.s32.totalorder %s278, %s279
      %p288 = scmp.eq.s32.totalorder %s32, 0
      %p289 = por %p287, %p288
      %p290 = scmp.ne.s32.totalorder %s278, %s279
      %p291 = scmp.eq.s32.totalorder %s33, 1
      %p292 = por %p290, %p291
      %p294 = scmp.ne.s32.totalorder %s279, %s293
      %p295 = scmp.eq.s32.totalorder %s33, 0
      %p296 = por %p294, %p295
      %s298 = sadd.s32 %s297, 1
      %p301 = scmp.eq.s32.totalorder %s27, 1
      %p302 = scmp.ne.s32.totalorder %s297, %s299
      %p303 = scmp.eq.s32.totalorder %s27, 0
      %p304 = por %p302, %p303
      %p305 = scmp.ne.s32.totalorder %s297, %s299
      %p306 = scmp.eq.s32.totalorder %s32, 1
      %p307 = por %p305, %p306
      %p308 = scmp.ne.s32.totalorder %s299, %s300
      %p309 = scmp.eq.s32.totalorder %s32, 0
      %p310 = por %p308, %p309
      %p311 = scmp.ne.s32.totalorder %s299, %s300
      %p312 = scmp.eq.s32.totalorder %s33, 1
      %p313 = por %p311, %p312
      %p315 = scmp.ne.s32.totalorder %s300, %s314
      %p316 = scmp.eq.s32.totalorder %s33, 0
      %p317 = por %p315, %p316
      %s319 = sadd.s32 %s318, 1
      %p322 = scmp.eq.s32.totalorder %s27, 1
      %p323 = scmp.ne.s32.totalorder %s318, %s320
      %p324 = scmp.eq.s32.totalorder %s27, 0
      %p325 = por %p323, %p324
      %p326 = scmp.ne.s32.totalorder %s318, %s320
      %p327 = scmp.eq.s32.totalorder %s32, 1
      %p328 = por %p326, %p327
      %p329 = scmp.ne.s32.totalorder %s320, %s321
      %p330 = scmp.eq.s32.totalorder %s32, 0
      %p331 = por %p329, %p330
      %p332 = scmp.ne.s32.totalorder %s320, %s321
      %p333 = scmp.eq.s32.totalorder %s33, 1
      %p334 = por %p332, %p333
      %p336 = scmp.ne.s32.totalorder %s321, %s335
      %p337 = scmp.eq.s32.totalorder %s33, 0
      %p338 = por %p336, %p337
      %s339 = ssub.s32 %s27, %s34
      %p340 = scmp.eq.s32.totalorder %s339, 0
      %s342 = sadd.s32 %s341, 1
      %s343 = scalar_select %p340, %s341, %s342
      %p346 = pneg %p340
      %p347 = scmp.eq.s32.totalorder %s27, 1
      %p348 = por %p346, %p347
      %p349 = scmp.ne.s32.totalorder %s341, %s344
      %p350 = scmp.eq.s32.totalorder %s27, 0
      %p351 = por %p349, %p350
      %p352 = scmp.ne.s32.totalorder %s341, %s344
      %p353 = scmp.eq.s32.totalorder %s32, 1
      %p354 = por %p352, %p353
      %p355 = scmp.ne.s32.totalorder %s344, %s345
      %p356 = scmp.eq.s32.totalorder %s32, 0
      %p357 = por %p355, %p356
      %p358 = scmp.ne.s32.totalorder %s344, %s345
      %p359 = scmp.eq.s32.totalorder %s33, 1
      %p360 = por %p358, %p359
      %p362 = scmp.ne.s32.totalorder %s345, %s361
      %p363 = scmp.eq.s32.totalorder %s33, 0
      %p364 = por %p362, %p363
      %p365 = scmp.le.s32.totalorder 1, %s27
      %p366 = scmp.lt.s32.totalorder %s27, 3
      %p367 = pnand %p365, %p366
      %p368 = pneg %p367
      // Predicated region
      $region9: #{tpu_custom_call.1} parent=5 // pred_check
        _
      $region10: #{tpu_custom_call.1} parent=5 // pred_check_branch
        %370 = sbr.rel (%p367) target = $region12
      $region11: #{tpu_custom_call.1} parent=5 // pred_region
        %s371 = ssub.s32 %s27, 1
        // Predicated region
        $region13: #{tpu_custom_call.1} parent=11 // pred_check
          %p372 = pneg %p100
        $region14: #{tpu_custom_call.1} parent=11 // pred_check_branch
          %374 = sbr.rel (%p372) target = $region16
        $region15: #{tpu_custom_call.1} parent=11 // pred_region
          %s376 = ssub.s32 16, 16
          %377 = vsyncadd [#allocation4], %s376
          %s379 = sshll.u32 [#allocation3], 4
          %s380 = int_to_ptr.vmem [resolvable:$true] %s379
          %382 = dma.hbm_to_vmem [thread:$0]  %s2, 16, %s380, [#allocation4]
        $region16: #{tpu_custom_call.1} parent=11 // pred_fallthru
          _
        // Predicated region
        $region17: #{tpu_custom_call.1} parent=11 // pred_check
          %p383 = pneg %p121
        $region18: #{tpu_custom_call.1} parent=11 // pred_check_branch
          %385 = sbr.rel (%p383) target = $region20
        $region19: #{tpu_custom_call.1} parent=11 // pred_region
          %s387 = ssub.s32 16, 16
          %388 = vsyncadd [#allocation7], %s387
          %s390 = sshll.u32 [#allocation6], 4
          %s391 = int_to_ptr.vmem [resolvable:$true] %s390
          %393 = dma.hbm_to_vmem [thread:$0]  %s3, 16, %s391, [#allocation7]
        $region20: #{tpu_custom_call.1} parent=11 // pred_fallthru
          _
        // Predicated region
        $region21: #{tpu_custom_call.1} parent=11 // pred_check
          %p394 = pneg %p142
        $region22: #{tpu_custom_call.1} parent=11 // pred_check_branch
          %396 = sbr.rel (%p394) target = $region24
        $region23: #{tpu_custom_call.1} parent=11 // pred_region
          %s398 = ssub.s32 16, 16
          %399 = vsyncadd [#allocation7], %s398
          %s401 = sshll.u32 [#allocation8], 4
          %s402 = int_to_ptr.vmem [resolvable:$true] %s401
          %404 = dma.hbm_to_vmem [thread:$0]  %s4, 16, %s402, [#allocation7]
        $region24: #{tpu_custom_call.1} parent=11 // pred_fallthru
          _
        // Predicated region
        $region25: #{tpu_custom_call.1} parent=11 // pred_check
          %p405 = pneg %p163
        $region26: #{tpu_custom_call.1} parent=11 // pred_check_branch
          %407 = sbr.rel (%p405) target = $region28
        $region27: #{tpu_custom_call.1} parent=11 // pred_region
          %s409 = ssub.s32 16, 16
          %410 = vsyncadd [#allocation10], %s409
          %s412 = sshll.u32 [#allocation9], 4
          %s413 = int_to_ptr.vmem [resolvable:$true] %s412
          %415 = dma.hbm_to_vmem [thread:$0]  %s5, 16, %s413, [#allocation10]
        $region28: #{tpu_custom_call.1} parent=11 // pred_fallthru
          _
        // Predicated region
        $region29: #{tpu_custom_call.1} parent=11 // pred_check
          %p416 = pneg %p184
        $region30: #{tpu_custom_call.1} parent=11 // pred_check_branch
          %418 = sbr.rel (%p416) target = $region32
        $region31: #{tpu_custom_call.1} parent=11 // pred_region
          _
        $region32: #{tpu_custom_call.1} parent=11 // pred_fallthru
          _
        // Predicated region
        $region33: #{tpu_custom_call.1} parent=11 // pred_check
          %p419 = pneg %p205
        $region34: #{tpu_custom_call.1} parent=11 // pred_check_branch
          %421 = sbr.rel (%p419) target = $region36
        $region35: #{tpu_custom_call.1} parent=11 // pred_region
          %s423 = ssub.s32 16, 16
          %424 = vsyncadd [#allocation10], %s423
          %s426 = sshll.u32 [#allocation11], 4
          %s427 = int_to_ptr.vmem [resolvable:$true] %s426
          %429 = dma.hbm_to_vmem [thread:$0]  %s7, 16, %s427, [#allocation10]
        $region36: #{tpu_custom_call.1} parent=11 // pred_fallthru
          _
        // Predicated region
        $region37: #{tpu_custom_call.1} parent=11 // pred_check
          %p430 = pneg %p226
        $region38: #{tpu_custom_call.1} parent=11 // pred_check_branch
          %432 = sbr.rel (%p430) target = $region40
        $region39: #{tpu_custom_call.1} parent=11 // pred_region
          %s434 = ssub.s32 256, 256
          %435 = vsyncadd [#allocation13], %s434
          %s436 = sshll.u32 [#allocation12], 4
          %s437 = int_to_ptr.vmem [resolvable:$true] %s436
          %442 = dma.hbm_to_vmem [thread:$0]  %s8, 256, %s437, [#allocation13], 64, 64, 4
        $region40: #{tpu_custom_call.1} parent=11 // pred_fallthru
          _
        // Predicated region
        $region41: #{tpu_custom_call.1} parent=11 // pred_check
          %p443 = pneg %p247
        $region42: #{tpu_custom_call.1} parent=11 // pred_check_branch
          %445 = sbr.rel (%p443) target = $region44
        $region43: #{tpu_custom_call.1} parent=11 // pred_region
          %s447 = ssub.s32 16, 16
          %448 = vsyncadd [#allocation13], %s447
          %s450 = sshll.u32 [#allocation14], 4
          %s451 = int_to_ptr.vmem [resolvable:$true] %s450
          %453 = dma.hbm_to_vmem [thread:$0]  %s9, 16, %s451, [#allocation13]
        $region44: #{tpu_custom_call.1} parent=11 // pred_fallthru
          _
        // Predicated region
        $region45: #{tpu_custom_call.1} parent=11 // pred_check
          %p454 = pneg %p268
        $region46: #{tpu_custom_call.1} parent=11 // pred_check_branch
          %456 = sbr.rel (%p454) target = $region48
        $region47: #{tpu_custom_call.1} parent=11 // pred_region
          _
        $region48: #{tpu_custom_call.1} parent=11 // pred_fallthru
          _
        // Predicated region
        $region49: #{tpu_custom_call.1} parent=11 // pred_check
          %p457 = pneg %p289
        $region50: #{tpu_custom_call.1} parent=11 // pred_check_branch
          %459 = sbr.rel (%p457) target = $region52
        $region51: #{tpu_custom_call.1} parent=11 // pred_region
          _
        $region52: #{tpu_custom_call.1} parent=11 // pred_fallthru
          _
        // Predicated region
        $region53: #{tpu_custom_call.1} parent=11 // pred_check
          %p460 = pneg %p310
        $region54: #{tpu_custom_call.1} parent=11 // pred_check_branch
          %462 = sbr.rel (%p460) target = $region56
        $region55: #{tpu_custom_call.1} parent=11 // pred_region
          _
        $region56: #{tpu_custom_call.1} parent=11 // pred_fallthru
          _
        // Predicated region
        $region57: #{tpu_custom_call.1} parent=11 // pred_check
          %p463 = pneg %p331
        $region58: #{tpu_custom_call.1} parent=11 // pred_check_branch
          %465 = sbr.rel (%p463) target = $region60
        $region59: #{tpu_custom_call.1} parent=11 // pred_region
          _
        $region60: #{tpu_custom_call.1} parent=11 // pred_fallthru
          _
      $region12: #{tpu_custom_call.1} parent=5 // pred_fallthru
        _
      %p466 = scmp.lt.s32.totalorder %s27, 2
      // Predicated region
      $region61: #{tpu_custom_call.1} parent=5 // pred_check
        %p467 = pneg %p466
      $region62: #{tpu_custom_call.1} parent=5 // pred_check_branch
        %469 = sbr.rel (%p467) target = $region64
      $region63: #{tpu_custom_call.1} parent=5 // pred_region
        // Predicated region
        $region65: #{tpu_custom_call.1} parent=63 // pred_check
          %p470 = pneg %p47
        $region66: #{tpu_custom_call.1} parent=63 // pred_check_branch
          %472 = sbr.rel (%p470) target = $region68
        $region67: #{tpu_custom_call.1} parent=63 // pred_region
          %p473 = scmp.lt.s32.totalorder %s27, 1
          %s474 = scalar_select %p473, %s27, 1
          %s475 = smul.addr %s474, 8
          %s476 = scalar_lea.vmem %s0, %s475
        $region68: #{tpu_custom_call.1} parent=63 // pred_fallthru
          _
        // Predicated region
        $region69: #{tpu_custom_call.1} parent=63 // pred_check
          %p477 = pneg %p73
        $region70: #{tpu_custom_call.1} parent=63 // pred_check_branch
          %479 = sbr.rel (%p477) target = $region72
        $region71: #{tpu_custom_call.1} parent=63 // pred_region
          %s480 = sand.u32 %s63, 1
          %s481 = sand.u32 %s63, 1
          %s482 = smul.addr %s481, 24
          %s483 = scalar_lea.vmem [#allocation2], %s482
          %s484 = smul.addr %s27, 8
          %s485 = scalar_lea.vmem %s1, %s484
          // Predicated region
          $region73: #{tpu_custom_call.1} parent=71 // pred_check
            _
          $region74: #{tpu_custom_call.1} parent=71 // pred_check_branch
            %487 = sbr.rel (0) target = $region76
          $region75: #{tpu_custom_call.1} parent=71 // pred_region
            // Predicated region
            $region77: #{tpu_custom_call.1} parent=75 // pred_check
              _
            $region78: #{tpu_custom_call.1} parent=75 // pred_check_branch
              %489 = sbr.rel (0) target = $region80
            $region79: #{tpu_custom_call.1} parent=75 // pred_region
              // Predicated region
              $region92: #{tpu_custom_call.1} parent=79 // pred_check
                _
              $region93: #{tpu_custom_call.1} parent=79 // pred_check_branch
                %508 = sbr.rel (0) target = $region95
              $region94: #{tpu_custom_call.1} parent=79 // pred_region
                loop: start=0, step=1, limit=1
                $region96: #{tpu_custom_call.1} parent=94 // loop_pre_header
                  _
                $region97: #{tpu_custom_call.1} parent=94 // loop_header
                  %s510 = sphi 0, %s514
                  %p511 = scmp.ge.s32.totalorder %s510, 1
                  %s515 = sphi %s485, %s485
                  %s516 = sphi %s483, %s483
                $region98: #{tpu_custom_call.1} parent=94 // loop_header_branch
                  %513 = sbr.rel (%p511) target = $region102
                $region99: #{tpu_custom_call.1} parent=94 // loop_body
                  %v517 = vld [vmem:[%s515] sm:$0xff]
                  %518 = vst [vmem:[%s516] sm:$0xff] %v517
                  %v519 = vld [vmem:[%s515 + $0x10] sm:$0xff]
                  %520 = vst [vmem:[%s516 + $0x8] sm:$0xff] %v519
                  %v521 = vld [vmem:[%s515 + $0x20] sm:$0xff]
                  %522 = vst [vmem:[%s516 + $0x10] sm:$0xff] %v521
                $region100: #{tpu_custom_call.1} parent=94 // loop_footer
                  %s514 = sadd.s32 1, %s510
                $region101: #{tpu_custom_call.1} parent=94 // loop_footer_branch
                  %509 = sbr.rel target = $region97
                $region102: #{tpu_custom_call.1} parent=94 // loop_exit
                  _
              $region95: #{tpu_custom_call.1} parent=79 // pred_fallthru
                _
              // Predicated region
              $region103: #{tpu_custom_call.1} parent=79 // pred_check
                _
              $region104: #{tpu_custom_call.1} parent=79 // pred_check_branch
                %524 = sbr.rel target = $region106
              $region105: #{tpu_custom_call.1} parent=79 // pred_region
                _
              $region106: #{tpu_custom_call.1} parent=79 // pred_fallthru
                _
            $region80: #{tpu_custom_call.1} parent=75 // pred_fallthru
              _
            // Predicated region
            $region81: #{tpu_custom_call.1} parent=75 // pred_check
              _
            $region82: #{tpu_custom_call.1} parent=75 // pred_check_branch
              %491 = sbr.rel target = $region84
            $region83: #{tpu_custom_call.1} parent=75 // pred_region
              loop: start=0, step=1, limit=1
              $region85: #{tpu_custom_call.1} parent=83 // loop_pre_header
                _
              $region86: #{tpu_custom_call.1} parent=83 // loop_header
                %s494 = sphi 0, %s498
                %p495 = scmp.ge.s32.totalorder %s494, 1
                %s499 = sphi %s485, %s485
                %s500 = sphi %s483, %s483
              $region87: #{tpu_custom_call.1} parent=83 // loop_header_branch
                %497 = sbr.rel (%p495) target = $region91
              $region88: #{tpu_custom_call.1} parent=83 // loop_body
                %v501 = vld [vmem:[%s499] sm:$0xff]
                %502 = vst [vmem:[%s500] sm:$0xff] %v501
                %v503 = vld [vmem:[%s499 + $0x10] sm:$0xff]
                %504 = vst [vmem:[%s500 + $0x8] sm:$0xff] %v503
                %v505 = vld [vmem:[%s499 + $0x20] sm:$0xff]
                %506 = vst [vmem:[%s500 + $0x10] sm:$0xff] %v505
              $region89: #{tpu_custom_call.1} parent=83 // loop_footer
                %s498 = sadd.s32 1, %s494
              $region90: #{tpu_custom_call.1} parent=83 // loop_footer_branch
                %493 = sbr.rel target = $region86
              $region91: #{tpu_custom_call.1} parent=83 // loop_exit
                _
            $region84: #{tpu_custom_call.1} parent=75 // pred_fallthru
              _
          $region76: #{tpu_custom_call.1} parent=71 // pred_fallthru
            _
          %525 = vnop
        $region72: #{tpu_custom_call.1} parent=63 // pred_fallthru
          _
      $region64: #{tpu_custom_call.1} parent=5 // pred_fallthru
        _
      %p526 = scmp.le.s32.totalorder 1, %s27
      %p527 = scmp.lt.s32.totalorder %s27, 3
      %p528 = pnand %p526, %p527
      %p529 = pneg %p528
      // Predicated region
      $region107: #{tpu_custom_call.1} parent=5 // pred_check
        _
      $region108: #{tpu_custom_call.1} parent=5 // pred_check_branch
        %531 = sbr.rel (%p528) target = $region110
      $region109: #{tpu_custom_call.1} parent=5 // pred_region
        %s532 = ssub.s32 %s27, 1
        %s533 = sand.u32 %s66, 1
        %s534 = sand.u32 %s66, 1
        %s535 = smul.addr %s534, 24
        %s536 = scalar_lea.vmem [#allocation2], %s535
        // Predicated region
        $region111: #{tpu_custom_call.1} parent=109 // pred_check
          %p537 = pneg %p79
        $region112: #{tpu_custom_call.1} parent=109 // pred_check_branch
          %539 = sbr.rel (%p537) target = $region114
        $region113: #{tpu_custom_call.1} parent=109 // pred_region
          _
        $region114: #{tpu_custom_call.1} parent=109 // pred_fallthru
          _
        // Predicated region
        $region115: #{tpu_custom_call.1} parent=109 // pred_check
          %p540 = pneg %p100
        $region116: #{tpu_custom_call.1} parent=109 // pred_check_branch
          %542 = sbr.rel (%p540) target = $region118
        $region117: #{tpu_custom_call.1} parent=109 // pred_region
          %543 = dma.done [#allocation4], 16
        $region118: #{tpu_custom_call.1} parent=109 // pred_fallthru
          _
        // Predicated region
        $region119: #{tpu_custom_call.1} parent=109 // pred_check
          %p544 = pneg %p121
        $region120: #{tpu_custom_call.1} parent=109 // pred_check_branch
          %546 = sbr.rel (%p544) target = $region122
        $region121: #{tpu_custom_call.1} parent=109 // pred_region
          %547 = dma.done [#allocation7], 16
        $region122: #{tpu_custom_call.1} parent=109 // pred_fallthru
          _
        // Predicated region
        $region123: #{tpu_custom_call.1} parent=109 // pred_check
          %p548 = pneg %p142
        $region124: #{tpu_custom_call.1} parent=109 // pred_check_branch
          %550 = sbr.rel (%p548) target = $region126
        $region125: #{tpu_custom_call.1} parent=109 // pred_region
          %551 = dma.done [#allocation7], 16
        $region126: #{tpu_custom_call.1} parent=109 // pred_fallthru
          _
        // Predicated region
        $region127: #{tpu_custom_call.1} parent=109 // pred_check
          %p552 = pneg %p163
        $region128: #{tpu_custom_call.1} parent=109 // pred_check_branch
          %554 = sbr.rel (%p552) target = $region130
        $region129: #{tpu_custom_call.1} parent=109 // pred_region
          %555 = dma.done [#allocation10], 16
        $region130: #{tpu_custom_call.1} parent=109 // pred_fallthru
          _
        // Predicated region
        $region131: #{tpu_custom_call.1} parent=109 // pred_check
          %p556 = pneg %p205
        $region132: #{tpu_custom_call.1} parent=109 // pred_check_branch
          %558 = sbr.rel (%p556) target = $region134
        $region133: #{tpu_custom_call.1} parent=109 // pred_region
          %559 = dma.done [#allocation10], 16
        $region134: #{tpu_custom_call.1} parent=109 // pred_fallthru
          _
        // Predicated region
        $region135: #{tpu_custom_call.1} parent=109 // pred_check
          %p560 = pneg %p226
        $region136: #{tpu_custom_call.1} parent=109 // pred_check_branch
          %562 = sbr.rel (%p560) target = $region138
        $region137: #{tpu_custom_call.1} parent=109 // pred_region
          %563 = dma.done [#allocation13], 256
        $region138: #{tpu_custom_call.1} parent=109 // pred_fallthru
          _
        // Predicated region
        $region139: #{tpu_custom_call.1} parent=109 // pred_check
          %p564 = pneg %p247
        $region140: #{tpu_custom_call.1} parent=109 // pred_check_branch
          %566 = sbr.rel (%p564) target = $region142
        $region141: #{tpu_custom_call.1} parent=109 // pred_region
          %567 = dma.done [#allocation13], 16
        $region142: #{tpu_custom_call.1} parent=109 // pred_fallthru
          _
        %p568 = scmp.lt.s32.totalorder %s32, 1
        %s569 = scalar_select %p568, %s32, 1
        %s570 = smul.addr %s569, 8
        %s571 = scalar_lea.vmem %s0, %s570
        %p572 = pneg %p53
        %p573 = pneg %p50
        %s574 = sand.u32 %s66, 1
        %s575 = sand.u32 %s66, 1
        %s576 = smul.addr %s575, 24
        %s577 = scalar_lea.vmem [#allocation2], %s576
        %p578 = pneg %p79
        %p579 = pneg %p76
        %p580 = pneg %p100
        %p581 = pneg %p97
        %p582 = pneg %p121
        %p583 = pneg %p118
        %p584 = pneg %p142
        %p585 = pneg %p139
        %p586 = pneg %p163
        %p587 = pneg %p160
        %p588 = pneg %p184
        %p589 = pneg %p181
        %p590 = pneg %p205
        %p591 = pneg %p202
        %p592 = pneg %p226
        %p593 = pneg %p223
        %p594 = pneg %p247
        %p595 = pneg %p244
        %p596 = pneg %p268
        %p597 = pneg %p265
        %p598 = pneg %p289
        %p599 = pneg %p286
        %p600 = pneg %p310
        %p601 = pneg %p307
        %p602 = pneg %p331
        %p603 = pneg %p328
        %p604 = pneg %p357
        %p605 = pneg %p354
        %s606 = sand.u32 %s344, 1
        %s607 = scalar_lea.sflag [#allocation5], %s606
        %s608 = sand.u32 %s344, 1
        %s609 = smul.addr %s608, 8
        %s610 = scalar_lea.vmem [#allocation15], %s609
        %p611 = scmp.lt.s32.totalorder %s32, 1
        %s612 = scalar_select %p611, %s32, 1
        %s613 = smul.addr %s612, 8
        %s614 = scalar_lea.vmem %s0, %s613
        %v616 = vld [vmem:[%s614] sm:$0xff]
        %v617 = vld [vmem:[#allocation3] sm:$0x1]
        %v618 = vld [vmem:[#allocation6] sm:$0x1]
        %vm619 = vcmask 261120
        %v620 = vsel %vm619, %v616, 0.0
        %621 = vadd.xlane.f32.xlu0 %v620
        %v622 = vpop.xlane.xlu0 %621
        %v623 = vrcp.pop 32.0
        %v624 = vmul.f32 %v622, %v623
        %v625 = vsub.f32 %v616, %v624
        %v626 = vmul.f32 %v625, %v625
        %v627 = vsel %vm619, %v626, 0.0
        %628 = vadd.xlane.f32.xlu0 %v627
        %v629 = vpop.xlane.xlu0 %628
        %v630 = vmul.f32 %v629, %v623
        %v631 = vadd.f32 %v630, 1e-05
        %v632 = vrsqrt.pop %v631
        %v633 = vmul.f32 %v625, %v632
        %v635 = vlaneseq
        %v636 = vshrl.u32 %v635, 7
        %v637 = vsub.s32 0, %v636
        %v638 = vrot.slane %v617, %v637
        %v640 = vmul.f32 %v633, %v638
        %v642 = vlaneseq
        %v643 = vshrl.u32 %v642, 7
        %v644 = vsub.s32 0, %v643
        %v645 = vrot.slane %v618, %v644
        %v647 = vadd.f32 %v640, %v645
        %v648 = vpack.c.bf16 %v647, %v647
        %v649 = vld [vmem:[%s6] sm:$0xf]
        %v650 = vld [vmem:[%s6 + $0x4] sm:$0xf]
        %v651 = vld [vmem:[%s6 + $0x8] sm:$0xf]
        %v652 = vld [vmem:[%s6 + $0xc] sm:$0xf]
        %v653 = vld [vmem:[#allocation11] sm:$0x1]
        %v655 = vlaneseq
        %v656 = vshrl.u32 %v655, 7
        %v657 = vsub.s32 0, %v656
        %v658 = vrot.slane %v653, %v657
        %v664 = vunpack.c.l.b16 %v649
        %v665 = vunpack.c.l.b16 %v650
        %v666 = vunpack.c.l.b16 %v651
        %v667 = vunpack.c.l.b16 %v652
        %v668 = vpack.c.b16 %v665, %v664
        %v669 = vpack.c.b16 %v667, %v666
        %v673 = vsel %vm619, %v648, 0
        %675 = vmatprep.subr.bf16.mxu0 0
        %676 = vmatpush1.bf16.msra.mxu0 %v668
        %677 = vmatprep.subr.bf16.mxu0 0
        %678 = vmatpush1.bf16.msra.mxu0 %v669
        %679 = vmatprep.subr.bf16.mxu0 0
        %680 = vmatpush1.bf16.msra.mxu0 0
        %681 = vmatprep.subr.bf16.mxu0 0
        %682 = vmatpush1.bf16.msra.mxu0 0
        %683 = vmatprep.subr.bf16.mxu0 0
        %684 = vmatpush1.bf16.msra.mxu0 0
        %685 = vmatprep.subr.bf16.mxu0 0
        %686 = vmatpush1.bf16.msra.mxu0 0
        %687 = vmatprep.subr.bf16.mxu0 0
        %688 = vmatpush1.bf16.msra.mxu0 0
        %689 = vmatprep.subr.bf16.mxu0 0
        %690 = vmatpush1.bf16.msra.mxu0 0
        %691 = vmatprep.subr.bf16.mxu0 0
        %692 = vmatpush1.bf16.msra.mxu0 0
        %693 = vmatprep.subr.bf16.mxu0 0
        %694 = vmatpush1.bf16.msra.mxu0 0
        %695 = vmatprep.subr.bf16.mxu0 0
        %696 = vmatpush1.bf16.msra.mxu0 0
        %697 = vmatprep.subr.bf16.mxu0 0
        %698 = vmatpush1.bf16.msra.mxu0 0
        %699 = vmatprep.subr.bf16.mxu0 0
        %700 = vmatpush1.bf16.msra.mxu0 0
        %701 = vmatprep.subr.bf16.mxu0 0
        %702 = vmatpush1.bf16.msra.mxu0 0
        %703 = vmatprep.subr.bf16.mxu0 0
        %704 = vmatpush1.bf16.msra.mxu0 0
        %705 = vmatprep.subr.bf16.mxu0 0
        %706 = vmatpush1.bf16.msra.mxu0 0
        %707 = vmatprep.mubr.bf16.mxu0 0
        %708 = vmatmul.mubr.bf16.gmra.mrb[0].mxu0 %v673
        %v709 = vpop.f32.mrb[0].mxu0
        %v710 = vadd.f32 %v658, %v709
        %v711 = vpop.f32.mrb[0].mxu0
        %v712 = vpop.f32.mrb[0].mxu0
        %v713 = vpop.f32.mrb[0].mxu0
        %714 = vdwg.mxu0
        %716 = vrot.lane.b32.xlu0 %v710, 120
        %v717 = vpop.permute.xlu0 %716
        %719 = vrot.lane.b32.xlu0 %v710, 112
        %v720 = vpop.permute.xlu0 %719
        %722 = vrot.lane.b32.xlu0 %v710, 104
        %v723 = vpop.permute.xlu0 %722
        %v725 = vcombine.low %v710, %v720
        %v726 = vcombine.high %v710, %v720
        %v728 = vunpack.c.l.s4 1983009808
        %v729 = vunpack.c.0.s8 %v728
        %v730 = vlaneseq
        %v731 = vshrl.u32 %v730, 7
        %v732 = vsub.s32 %v729, %v731
        %v733 = vrot.slane %v725, %v732
        %v735 = vunpack.c.l.s4 1983009808
        %v736 = vunpack.c.0.s8 %v735
        %v737 = vlaneseq
        %v738 = vshrl.u32 %v737, 7
        %v739 = vsub.s32 %v736, %v738
        %v740 = vrot.slane %v726, %v739
        %v741 = vcombine.low %v717, %v723
        %v742 = vcombine.high %v717, %v723
        %v744 = vunpack.c.l.s4 1983009808
        %v745 = vunpack.c.0.s8 %v744
        %v746 = vlaneseq
        %v747 = vshrl.u32 %v746, 7
        %v748 = vsub.s32 %v745, %v747
        %v749 = vrot.slane %v741, %v748
        %v751 = vunpack.c.l.s4 1983009808
        %v752 = vunpack.c.0.s8 %v751
        %v753 = vlaneseq
        %v754 = vshrl.u32 %v753, 7
        %v755 = vsub.s32 %v752, %v754
        %v756 = vrot.slane %v742, %v755
        %v757 = vcombine.low %v733, %v749
        %v758 = vcombine.high %v733, %v749
        %v760 = vunpack.c.l.s4 1934713408
        %v761 = vunpack.c.0.s8 %v760
        %v762 = vlaneseq
        %v763 = vshrl.u32 %v762, 7
        %v764 = vsub.s32 %v761, %v763
        %v765 = vrot.slane %v757, %v764
        %v767 = vunpack.c.l.s4 1934713408
        %v768 = vunpack.c.0.s8 %v767
        %v769 = vlaneseq
        %v770 = vshrl.u32 %v769, 7
        %v771 = vsub.s32 %v768, %v770
        %v772 = vrot.slane %v758, %v771
        %v773 = vcombine.low %v740, %v756
        %v774 = vcombine.high %v740, %v756
        %v776 = vunpack.c.l.s4 1934713408
        %v777 = vunpack.c.0.s8 %v776
        %v778 = vlaneseq
        %v779 = vshrl.u32 %v778, 7
        %v780 = vsub.s32 %v777, %v779
        %v781 = vrot.slane %v773, %v780
        %v783 = vunpack.c.l.s4 1934713408
        %v784 = vunpack.c.0.s8 %v783
        %v785 = vlaneseq
        %v786 = vshrl.u32 %v785, 7
        %v787 = vsub.s32 %v784, %v786
        %v788 = vrot.slane %v774, %v787
        %v789 = vcombine.high %v765, 0.0
        %v790 = vcombine.high %v772, 0.0
        %v791 = vcombine.high %v781, 0.0
        %v792 = vcombine.high %v788, 0.0
        %v793 = vcombine.low %v765, %v772
        %v795 = vunpack.c.l.s4 1983009808
        %v796 = vunpack.c.0.s8 %v795
        %v797 = vlaneseq
        %v798 = vshrl.u32 %v797, 7
        %v799 = vsub.s32 %v796, %v798
        %v800 = vrot.slane %v793, %v799
        %v801 = vcombine.low %v789, %v790
        %v803 = vunpack.c.l.s4 1983009808
        %v804 = vunpack.c.0.s8 %v803
        %v805 = vlaneseq
        %v806 = vshrl.u32 %v805, 7
        %v807 = vsub.s32 %v804, %v806
        %v808 = vrot.slane %v801, %v807
        %v809 = vcombine.low %v781, %v788
        %v811 = vunpack.c.l.s4 1983009808
        %v812 = vunpack.c.0.s8 %v811
        %v813 = vlaneseq
        %v814 = vshrl.u32 %v813, 7
        %v815 = vsub.s32 %v812, %v814
        %v816 = vrot.slane %v809, %v815
        %v817 = vcombine.low %v791, %v792
        %v819 = vunpack.c.l.s4 1983009808
        %v820 = vunpack.c.0.s8 %v819
        %v821 = vlaneseq
        %v822 = vshrl.u32 %v821, 7
        %v823 = vsub.s32 %v820, %v822
        %v824 = vrot.slane %v817, %v823
        %v825 = vcombine.low %v800, %v808
        %v826 = vcombine.high %v800, %v808
        %v828 = vunpack.c.l.s4 1934713408
        %v829 = vunpack.c.0.s8 %v828
        %v830 = vlaneseq
        %v831 = vshrl.u32 %v830, 7
        %v832 = vsub.s32 %v829, %v831
        %v833 = vrot.slane %v825, %v832
        %v835 = vunpack.c.l.s4 1934713408
        %v836 = vunpack.c.0.s8 %v835
        %v837 = vlaneseq
        %v838 = vshrl.u32 %v837, 7
        %v839 = vsub.s32 %v836, %v838
        %v840 = vrot.slane %v826, %v839
        %v841 = vcombine.low %v816, %v824
        %v842 = vcombine.high %v816, %v824
        %v844 = vunpack.c.l.s4 1934713408
        %v845 = vunpack.c.0.s8 %v844
        %v846 = vlaneseq
        %v847 = vshrl.u32 %v846, 7
        %v848 = vsub.s32 %v845, %v847
        %v849 = vrot.slane %v841, %v848
        %v851 = vunpack.c.l.s4 1934713408
        %v852 = vunpack.c.0.s8 %v851
        %v853 = vlaneseq
        %v854 = vshrl.u32 %v853, 7
        %v855 = vsub.s32 %v852, %v854
        %v856 = vrot.slane %v842, %v855
        %v857 = vcombine.low %v833, %v849
        %v858 = vcombine.high %v833, %v849
        %v859 = vcombine.low %v840, %v856
        %v860 = vcombine.high %v840, %v856
        %v861 = vpack.c.bf16 %v857, %v857
        %v862 = vpack.c.bf16 %v858, %v858
        %v863 = vpack.c.bf16 %v859, %v859
        %v864 = vpack.c.bf16 %v860, %v860
        %865 = vrot.lane.b32.xlu0 %v710, 96
        %v866 = vpop.permute.xlu0 %865
        %867 = vrot.lane.b32.xlu0 %v717, 96
        %v868 = vpop.permute.xlu0 %867
        %869 = vrot.lane.b32.xlu0 %v720, 96
        %v870 = vpop.permute.xlu0 %869
        %871 = vrot.lane.b32.xlu0 %v723, 96
        %v872 = vpop.permute.xlu0 %871
        %v877 = vcombine.low %v866, %v870
        %v878 = vcombine.high %v866, %v870
        %v880 = vunpack.c.l.s4 1983009808
        %v881 = vunpack.c.0.s8 %v880
        %v882 = vlaneseq
        %v883 = vshrl.u32 %v882, 7
        %v884 = vsub.s32 %v881, %v883
        %v885 = vrot.slane %v877, %v884
        %v887 = vunpack.c.l.s4 1983009808
        %v888 = vunpack.c.0.s8 %v887
        %v889 = vlaneseq
        %v890 = vshrl.u32 %v889, 7
        %v891 = vsub.s32 %v888, %v890
        %v892 = vrot.slane %v878, %v891
        %v893 = vcombine.low %v868, %v872
        %v894 = vcombine.high %v868, %v872
        %v896 = vunpack.c.l.s4 1983009808
        %v897 = vunpack.c.0.s8 %v896
        %v898 = vlaneseq
        %v899 = vshrl.u32 %v898, 7
        %v900 = vsub.s32 %v897, %v899
        %v901 = vrot.slane %v893, %v900
        %v903 = vunpack.c.l.s4 1983009808
        %v904 = vunpack.c.0.s8 %v903
        %v905 = vlaneseq
        %v906 = vshrl.u32 %v905, 7
        %v907 = vsub.s32 %v904, %v906
        %v908 = vrot.slane %v894, %v907
        %v909 = vcombine.low %v885, %v901
        %v910 = vcombine.high %v885, %v901
        %v912 = vunpack.c.l.s4 1934713408
        %v913 = vunpack.c.0.s8 %v912
        %v914 = vlaneseq
        %v915 = vshrl.u32 %v914, 7
        %v916 = vsub.s32 %v913, %v915
        %v917 = vrot.slane %v909, %v916
        %v919 = vunpack.c.l.s4 1934713408
        %v920 = vunpack.c.0.s8 %v919
        %v921 = vlaneseq
        %v922 = vshrl.u32 %v921, 7
        %v923 = vsub.s32 %v920, %v922
        %v924 = vrot.slane %v910, %v923
        %v925 = vcombine.low %v892, %v908
        %v926 = vcombine.high %v892, %v908
        %v928 = vunpack.c.l.s4 1934713408
        %v929 = vunpack.c.0.s8 %v928
        %v930 = vlaneseq
        %v931 = vshrl.u32 %v930, 7
        %v932 = vsub.s32 %v929, %v931
        %v933 = vrot.slane %v925, %v932
        %v935 = vunpack.c.l.s4 1934713408
        %v936 = vunpack.c.0.s8 %v935
        %v937 = vlaneseq
        %v938 = vshrl.u32 %v937, 7
        %v939 = vsub.s32 %v936, %v938
        %v940 = vrot.slane %v926, %v939
        %v941 = vcombine.high %v917, 0.0
        %v942 = vcombine.high %v924, 0.0
        %v943 = vcombine.high %v933, 0.0
        %v944 = vcombine.high %v940, 0.0
        %v945 = vcombine.low %v917, %v924
        %v947 = vunpack.c.l.s4 1983009808
        %v948 = vunpack.c.0.s8 %v947
        %v949 = vlaneseq
        %v950 = vshrl.u32 %v949, 7
        %v951 = vsub.s32 %v948, %v950
        %v952 = vrot.slane %v945, %v951
        %v953 = vcombine.low %v941, %v942
        %v955 = vunpack.c.l.s4 1983009808
        %v956 = vunpack.c.0.s8 %v955
        %v957 = vlaneseq
        %v958 = vshrl.u32 %v957, 7
        %v959 = vsub.s32 %v956, %v958
        %v960 = vrot.slane %v953, %v959
        %v961 = vcombine.low %v933, %v940
        %v963 = vunpack.c.l.s4 1983009808
        %v964 = vunpack.c.0.s8 %v963
        %v965 = vlaneseq
        %v966 = vshrl.u32 %v965, 7
        %v967 = vsub.s32 %v964, %v966
        %v968 = vrot.slane %v961, %v967
        %v969 = vcombine.low %v943, %v944
        %v971 = vunpack.c.l.s4 1983009808
        %v972 = vunpack.c.0.s8 %v971
        %v973 = vlaneseq
        %v974 = vshrl.u32 %v973, 7
        %v975 = vsub.s32 %v972, %v974
        %v976 = vrot.slane %v969, %v975
        %v977 = vcombine.low %v952, %v960
        %v978 = vcombine.high %v952, %v960
        %v980 = vunpack.c.l.s4 1934713408
        %v981 = vunpack.c.0.s8 %v980
        %v982 = vlaneseq
        %v983 = vshrl.u32 %v982, 7
        %v984 = vsub.s32 %v981, %v983
        %v985 = vrot.slane %v977, %v984
        %v987 = vunpack.c.l.s4 1934713408
        %v988 = vunpack.c.0.s8 %v987
        %v989 = vlaneseq
        %v990 = vshrl.u32 %v989, 7
        %v991 = vsub.s32 %v988, %v990
        %v992 = vrot.slane %v978, %v991
        %v993 = vcombine.low %v968, %v976
        %v994 = vcombine.high %v968, %v976
        %v996 = vunpack.c.l.s4 1934713408
        %v997 = vunpack.c.0.s8 %v996
        %v998 = vlaneseq
        %v999 = vshrl.u32 %v998, 7
        %v1000 = vsub.s32 %v997, %v999
        %v1001 = vrot.slane %v993, %v1000
        %v1003 = vunpack.c.l.s4 1934713408
        %v1004 = vunpack.c.0.s8 %v1003
        %v1005 = vlaneseq
        %v1006 = vshrl.u32 %v1005, 7
        %v1007 = vsub.s32 %v1004, %v1006
        %v1008 = vrot.slane %v994, %v1007
        %v1009 = vcombine.low %v985, %v1001
        %v1010 = vcombine.high %v985, %v1001
        %v1011 = vcombine.low %v992, %v1008
        %v1012 = vcombine.high %v992, %v1008
        %v1013 = vpack.c.bf16 %v1009, %v1009
        %v1014 = vpack.c.bf16 %v1010, %v1010
        %v1015 = vpack.c.bf16 %v1011, %v1011
        %v1016 = vpack.c.bf16 %v1012, %v1012
        %1017 = vrot.lane.b32.xlu0 %v710, 64
        %v1018 = vpop.permute.xlu0 %1017
        %1019 = vrot.lane.b32.xlu0 %v717, 64
        %v1020 = vpop.permute.xlu0 %1019
        %1021 = vrot.lane.b32.xlu0 %v720, 64
        %v1022 = vpop.permute.xlu0 %1021
        %1023 = vrot.lane.b32.xlu0 %v723, 64
        %v1024 = vpop.permute.xlu0 %1023
        %v1029 = vcombine.low %v1018, %v1022
        %v1030 = vcombine.high %v1018, %v1022
        %v1032 = vunpack.c.l.s4 1983009808
        %v1033 = vunpack.c.0.s8 %v1032
        %v1034 = vlaneseq
        %v1035 = vshrl.u32 %v1034, 7
        %v1036 = vsub.s32 %v1033, %v1035
        %v1037 = vrot.slane %v1029, %v1036
        %v1039 = vunpack.c.l.s4 1983009808
        %v1040 = vunpack.c.0.s8 %v1039
        %v1041 = vlaneseq
        %v1042 = vshrl.u32 %v1041, 7
        %v1043 = vsub.s32 %v1040, %v1042
        %v1044 = vrot.slane %v1030, %v1043
        %v1045 = vcombine.low %v1020, %v1024
        %v1046 = vcombine.high %v1020, %v1024
        %v1048 = vunpack.c.l.s4 1983009808
        %v1049 = vunpack.c.0.s8 %v1048
        %v1050 = vlaneseq
        %v1051 = vshrl.u32 %v1050, 7
        %v1052 = vsub.s32 %v1049, %v1051
        %v1053 = vrot.slane %v1045, %v1052
        %v1055 = vunpack.c.l.s4 1983009808
        %v1056 = vunpack.c.0.s8 %v1055
        %v1057 = vlaneseq
        %v1058 = vshrl.u32 %v1057, 7
        %v1059 = vsub.s32 %v1056, %v1058
        %v1060 = vrot.slane %v1046, %v1059
        %v1061 = vcombine.low %v1037, %v1053
        %v1062 = vcombine.high %v1037, %v1053
        %v1064 = vunpack.c.l.s4 1934713408
        %v1065 = vunpack.c.0.s8 %v1064
        %v1066 = vlaneseq
        %v1067 = vshrl.u32 %v1066, 7
        %v1068 = vsub.s32 %v1065, %v1067
        %v1069 = vrot.slane %v1061, %v1068
        %v1071 = vunpack.c.l.s4 1934713408
        %v1072 = vunpack.c.0.s8 %v1071
        %v1073 = vlaneseq
        %v1074 = vshrl.u32 %v1073, 7
        %v1075 = vsub.s32 %v1072, %v1074
        %v1076 = vrot.slane %v1062, %v1075
        %v1077 = vcombine.low %v1044, %v1060
        %v1078 = vcombine.high %v1044, %v1060
        %v1080 = vunpack.c.l.s4 1934713408
        %v1081 = vunpack.c.0.s8 %v1080
        %v1082 = vlaneseq
        %v1083 = vshrl.u32 %v1082, 7
        %v1084 = vsub.s32 %v1081, %v1083
        %v1085 = vrot.slane %v1077, %v1084
        %v1087 = vunpack.c.l.s4 1934713408
        %v1088 = vunpack.c.0.s8 %v1087
        %v1089 = vlaneseq
        %v1090 = vshrl.u32 %v1089, 7
        %v1091 = vsub.s32 %v1088, %v1090
        %v1092 = vrot.slane %v1078, %v1091
        %v1093 = vcombine.high %v1069, 0.0
        %v1094 = vcombine.high %v1076, 0.0
        %v1095 = vcombine.high %v1085, 0.0
        %v1096 = vcombine.high %v1092, 0.0
        %v1097 = vcombine.low %v1069, %v1076
        %v1099 = vunpack.c.l.s4 1983009808
        %v1100 = vunpack.c.0.s8 %v1099
        %v1101 = vlaneseq
        %v1102 = vshrl.u32 %v1101, 7
        %v1103 = vsub.s32 %v1100, %v1102
        %v1104 = vrot.slane %v1097, %v1103
        %v1105 = vcombine.low %v1093, %v1094
        %v1107 = vunpack.c.l.s4 1983009808
        %v1108 = vunpack.c.0.s8 %v1107
        %v1109 = vlaneseq
        %v1110 = vshrl.u32 %v1109, 7
        %v1111 = vsub.s32 %v1108, %v1110
        %v1112 = vrot.slane %v1105, %v1111
        %v1113 = vcombine.low %v1085, %v1092
        %v1115 = vunpack.c.l.s4 1983009808
        %v1116 = vunpack.c.0.s8 %v1115
        %v1117 = vlaneseq
        %v1118 = vshrl.u32 %v1117, 7
        %v1119 = vsub.s32 %v1116, %v1118
        %v1120 = vrot.slane %v1113, %v1119
        %v1121 = vcombine.low %v1095, %v1096
        %v1123 = vunpack.c.l.s4 1983009808
        %v1124 = vunpack.c.0.s8 %v1123
        %v1125 = vlaneseq
        %v1126 = vshrl.u32 %v1125, 7
        %v1127 = vsub.s32 %v1124, %v1126
        %v1128 = vrot.slane %v1121, %v1127
        %v1129 = vcombine.low %v1104, %v1112
        %v1130 = vcombine.high %v1104, %v1112
        %v1132 = vunpack.c.l.s4 1934713408
        %v1133 = vunpack.c.0.s8 %v1132
        %v1134 = vlaneseq
        %v1135 = vshrl.u32 %v1134, 7
        %v1136 = vsub.s32 %v1133, %v1135
        %v1137 = vrot.slane %v1129, %v1136
        %v1139 = vunpack.c.l.s4 1934713408
        %v1140 = vunpack.c.0.s8 %v1139
        %v1141 = vlaneseq
        %v1142 = vshrl.u32 %v1141, 7
        %v1143 = vsub.s32 %v1140, %v1142
        %v1144 = vrot.slane %v1130, %v1143
        %v1145 = vcombine.low %v1120, %v1128
        %v1146 = vcombine.high %v1120, %v1128
        %v1148 = vunpack.c.l.s4 1934713408
        %v1149 = vunpack.c.0.s8 %v1148
        %v1150 = vlaneseq
        %v1151 = vshrl.u32 %v1150, 7
        %v1152 = vsub.s32 %v1149, %v1151
        %v1153 = vrot.slane %v1145, %v1152
        %v1155 = vunpack.c.l.s4 1934713408
        %v1156 = vunpack.c.0.s8 %v1155
        %v1157 = vlaneseq
        %v1158 = vshrl.u32 %v1157, 7
        %v1159 = vsub.s32 %v1156, %v1158
        %v1160 = vrot.slane %v1146, %v1159
        %v1161 = vcombine.low %v1137, %v1153
        %v1162 = vcombine.high %v1137, %v1153
        %v1163 = vcombine.low %v1144, %v1160
        %v1164 = vcombine.high %v1144, %v1160
        %v1165 = vpack.c.bf16 %v1161, %v1161
        %v1166 = vpack.c.bf16 %v1162, %v1162
        %v1167 = vpack.c.bf16 %v1163, %v1163
        %v1168 = vpack.c.bf16 %v1164, %v1164
        %vm1169 = vcmask 64512
        %v1171 = vsel %vm1169, %v861, 0
        %v1174 = vsel %vm1169, %v1013, 0
        %1176 = vmatprep.subr.bf16.mxu0 0
        %1177 = vmatpush1.bf16.xpose.msra.mxu0 %v1174
        %1178 = vmatprep.subr.bf16.mxu0 0
        %1179 = vmatpush1.bf16.xpose.msra.mxu0 0
        %1180 = vmatprep.subr.bf16.mxu0 0
        %1181 = vmatpush1.bf16.xpose.msra.mxu0 0
        %1182 = vmatprep.subr.bf16.mxu0 0
        %1183 = vmatpush1.bf16.xpose.msra.mxu0 0
        %1184 = vmatprep.subr.bf16.mxu0 0
        %1185 = vmatpush1.bf16.xpose.msra.mxu0 0
        %1186 = vmatprep.subr.bf16.mxu0 0
        %1187 = vmatpush1.bf16.xpose.msra.mxu0 0
        %1188 = vmatprep.subr.bf16.mxu0 0
        %1189 = vmatpush1.bf16.xpose.msra.mxu0 0
        %1190 = vmatprep.subr.bf16.mxu0 0
        %1191 = vmatpush1.bf16.xpose.msra.mxu0 0
        %1192 = vmatprep.subr.bf16.mxu0 0
        %1193 = vmatpush1.bf16.xpose.msra.mxu0 0
        %1194 = vmatprep.subr.bf16.mxu0 0
        %1195 = vmatpush1.bf16.xpose.msra.mxu0 0
        %1196 = vmatprep.subr.bf16.mxu0 0
        %1197 = vmatpush1.bf16.xpose.msra.mxu0 0
        %1198 = vmatprep.subr.bf16.mxu0 0
        %1199 = vmatpush1.bf16.xpose.msra.mxu0 0
        %1200 = vmatprep.subr.bf16.mxu0 0
        %1201 = vmatpush1.bf16.xpose.msra.mxu0 0
        %1202 = vmatprep.subr.bf16.mxu0 0
        %1203 = vmatpush1.bf16.xpose.msra.mxu0 0
        %1204 = vmatprep.subr.bf16.mxu0 0
        %1205 = vmatpush1.bf16.xpose.msra.mxu0 0
        %1206 = vmatprep.subr.bf16.mxu0 0
        %1207 = vmatpush1.bf16.xpose.msra.mxu0 0
        %1208 = vmatprep.mubr.bf16.mxu0 0
        %1209 = vmatmul.mubr.bf16.gmra.mrb[0].mxu0 %v1171
        %v1210 = vpop.f32.mrb[0].mxu0
        %v1211 = vadd.f32 0.0, %v1210
        %v1212 = vpop.f32.mrb[0].mxu0
        %v1213 = vpop.f32.mrb[0].mxu0
        %v1214 = vpop.f32.mrb[0].mxu0
        %1215 = vdwg.mxu0
        %v1217 = vsel %vm1169, %v862, 0
        %v1220 = vsel %vm1169, %v1014, 0
        %1222 = vmatprep.subr.bf16.mxu0 0
        %1223 = vmatpush1.bf16.xpose.msra.mxu0 %v1220
        %1224 = vmatprep.subr.bf16.mxu0 0
        %1225 = vmatpush1.bf16.xpose.msra.mxu0 0
        %1226 = vmatprep.subr.bf16.mxu0 0
        %1227 = vmatpush1.bf16.xpose.msra.mxu0 0
        %1228 = vmatprep.subr.bf16.mxu0 0
        %1229 = vmatpush1.bf16.xpose.msra.mxu0 0
        %1230 = vmatprep.subr.bf16.mxu0 0
        %1231 = vmatpush1.bf16.xpose.msra.mxu0 0
        %1232 = vmatprep.subr.bf16.mxu0 0
        %1233 = vmatpush1.bf16.xpose.msra.mxu0 0
        %1234 = vmatprep.subr.bf16.mxu0 0
        %1235 = vmatpush1.bf16.xpose.msra.mxu0 0
        %1236 = vmatprep.subr.bf16.mxu0 0
        %1237 = vmatpush1.bf16.xpose.msra.mxu0 0
        %1238 = vmatprep.subr.bf16.mxu0 0
        %1239 = vmatpush1.bf16.xpose.msra.mxu0 0
        %1240 = vmatprep.subr.bf16.mxu0 0
        %1241 = vmatpush1.bf16.xpose.msra.mxu0 0
        %1242 = vmatprep.subr.bf16.mxu0 0
        %1243 = vmatpush1.bf16.xpose.msra.mxu0 0
        %1244 = vmatprep.subr.bf16.mxu0 0
        %1245 = vmatpush1.bf16.xpose.msra.mxu0 0
        %1246 = vmatprep.subr.bf16.mxu0 0
        %1247 = vmatpush1.bf16.xpose.msra.mxu0 0
        %1248 = vmatprep.subr.bf16.mxu0 0
        %1249 = vmatpush1.bf16.xpose.msra.mxu0 0
        %1250 = vmatprep.subr.bf16.mxu0 0
        %1251 = vmatpush1.bf16.xpose.msra.mxu0 0
        %1252 = vmatprep.subr.bf16.mxu0 0
        %1253 = vmatpush1.bf16.xpose.msra.mxu0 0
        %1254 = vmatprep.mubr.bf16.mxu0 0
        %1255 = vmatmul.mubr.bf16.gmra.mrb[0].mxu0 %v1217
        %v1256 = vpop.f32.mrb[0].mxu0
        %v1257 = vadd.f32 0.0, %v1256
        %v1258 = vpop.f32.mrb[0].mxu0
        %v1259 = vpop.f32.mrb[0].mxu0
        %v1260 = vpop.f32.mrb[0].mxu0
        %1261 = vdwg.mxu0
        %v1263 = vsel %vm1169, %v863, 0
        %v1266 = vsel %vm1169, %v1015, 0
        %1268 = vmatprep.subr.bf16.mxu0 0
        %1269 = vmatpush1.bf16.xpose.msra.mxu0 %v1266
        %1270 = vmatprep.subr.bf16.mxu0 0
        %1271 = vmatpush1.bf16.xpose.msra.mxu0 0
        %1272 = vmatprep.subr.bf16.mxu0 0
        %1273 = vmatpush1.bf16.xpose.msra.mxu0 0
        %1274 = vmatprep.subr.bf16.mxu0 0
        %1275 = vmatpush1.bf16.xpose.msra.mxu0 0
        %1276 = vmatprep.subr.bf16.mxu0 0
        %1277 = vmatpush1.bf16.xpose.msra.mxu0 0
        %1278 = vmatprep.subr.bf16.mxu0 0
        %1279 = vmatpush1.bf16.xpose.msra.mxu0 0
        %1280 = vmatprep.subr.bf16.mxu0 0
        %1281 = vmatpush1.bf16.xpose.msra.mxu0 0
        %1282 = vmatprep.subr.bf16.mxu0 0
        %1283 = vmatpush1.bf16.xpose.msra.mxu0 0
        %1284 = vmatprep.subr.bf16.mxu0 0
        %1285 = vmatpush1.bf16.xpose.msra.mxu0 0
        %1286 = vmatprep.subr.bf16.mxu0 0
        %1287 = vmatpush1.bf16.xpose.msra.mxu0 0
        %1288 = vmatprep.subr.bf16.mxu0 0
        %1289 = vmatpush1.bf16.xpose.msra.mxu0 0
        %1290 = vmatprep.subr.bf16.mxu0 0
        %1291 = vmatpush1.bf16.xpose.msra.mxu0 0
        %1292 = vmatprep.subr.bf16.mxu0 0
        %1293 = vmatpush1.bf16.xpose.msra.mxu0 0
        %1294 = vmatprep.subr.bf16.mxu0 0
        %1295 = vmatpush1.bf16.xpose.msra.mxu0 0
        %1296 = vmatprep.subr.bf16.mxu0 0
        %1297 = vmatpush1.bf16.xpose.msra.mxu0 0
        %1298 = vmatprep.subr.bf16.mxu0 0
        %1299 = vmatpush1.bf16.xpose.msra.mxu0 0
        %1300 = vmatprep.mubr.bf16.mxu0 0
        %1301 = vmatmul.mubr.bf16.gmra.mrb[0].mxu0 %v1263
        %v1302 = vpop.f32.mrb[0].mxu0
        %v1303 = vadd.f32 0.0, %v1302
        %v1304 = vpop.f32.mrb[0].mxu0
        %v1305 = vpop.f32.mrb[0].mxu0
        %v1306 = vpop.f32.mrb[0].mxu0
        %1307 = vdwg.mxu0
        %v1309 = vsel %vm1169, %v864, 0
        %v1312 = vsel %vm1169, %v1016, 0
        %1314 = vmatprep.subr.bf16.mxu0 0
        %1315 = vmatpush1.bf16.xpose.msra.mxu0 %v1312
        %1316 = vmatprep.subr.bf16.mxu0 0
        %1317 = vmatpush1.bf16.xpose.msra.mxu0 0
        %1318 = vmatprep.subr.bf16.mxu0 0
        %1319 = vmatpush1.bf16.xpose.msra.mxu0 0
        %1320 = vmatprep.subr.bf16.mxu0 0
        %1321 = vmatpush1.bf16.xpose.msra.mxu0 0
        %1322 = vmatprep.subr.bf16.mxu0 0
        %1323 = vmatpush1.bf16.xpose.msra.mxu0 0
        %1324 = vmatprep.subr.bf16.mxu0 0
        %1325 = vmatpush1.bf16.xpose.msra.mxu0 0
        %1326 = vmatprep.subr.bf16.mxu0 0
        %1327 = vmatpush1.bf16.xpose.msra.mxu0 0
        %1328 = vmatprep.subr.bf16.mxu0 0
        %1329 = vmatpush1.bf16.xpose.msra.mxu0 0
        %1330 = vmatprep.subr.bf16.mxu0 0
        %1331 = vmatpush1.bf16.xpose.msra.mxu0 0
        %1332 = vmatprep.subr.bf16.mxu0 0
        %1333 = vmatpush1.bf16.xpose.msra.mxu0 0
        %1334 = vmatprep.subr.bf16.mxu0 0
        %1335 = vmatpush1.bf16.xpose.msra.mxu0 0
        %1336 = vmatprep.subr.bf16.mxu0 0
        %1337 = vmatpush1.bf16.xpose.msra.mxu0 0
        %1338 = vmatprep.subr.bf16.mxu0 0
        %1339 = vmatpush1.bf16.xpose.msra.mxu0 0
        %1340 = vmatprep.subr.bf16.mxu0 0
        %1341 = vmatpush1.bf16.xpose.msra.mxu0 0
        %1342 = vmatprep.subr.bf16.mxu0 0
        %1343 = vmatpush1.bf16.xpose.msra.mxu0 0
        %1344 = vmatprep.subr.bf16.mxu0 0
        %1345 = vmatpush1.bf16.xpose.msra.mxu0 0
        %1346 = vmatprep.mubr.bf16.mxu0 0
        %1347 = vmatmul.mubr.bf16.gmra.mrb[0].mxu0 %v1309
        %v1348 = vpop.f32.mrb[0].mxu0
        %v1349 = vadd.f32 0.0, %v1348
        %v1350 = vpop.f32.mrb[0].mxu0
        %v1351 = vpop.f32.mrb[0].mxu0
        %v1352 = vpop.f32.mrb[0].mxu0
        %1353 = vdwg.mxu0
        %v1354 = vmul.f32 %v1211, 0.35355338
        %v1355 = vmul.f32 %v1257, 0.35355338
        %v1356 = vmul.f32 %v1303, 0.35355338
        %v1357 = vmul.f32 %v1349, 0.35355338
        %v1358 = vlaneseq
        %v1359 = vshrl.u32 %v1358, 7
        %v1360 = vlaneseq
        %v1361 = vand.u32 %v1360, 127
        %vm1362 = vcmp.ge.s32.totalorder %v1359, %v1361
        %v1363 = vsel %vm1362, 1, 0
        %vm1364 = vcmp.eq.s32.totalorder %v1363, 1
        %v1365 = vsel %vm1364, %v1354, -1e+30
        %v1366 = vsel %vm1364, %v1355, -1e+30
        %v1367 = vsel %vm1364, %v1356, -1e+30
        %v1368 = vsel %vm1364, %v1357, -1e+30
        %v1369 = vsel %vm1169, %v1365, -inf
        %1370 = vmax.xlane.f32.xlu0 %v1369
        %v1371 = vpop.xlane.xlu0 %1370
        %v1372 = vsel %vm1169, %v1366, -inf
        %1373 = vmax.xlane.f32.xlu0 %v1372
        %v1374 = vpop.xlane.xlu0 %1373
        %v1375 = vsel %vm1169, %v1367, -inf
        %1376 = vmax.xlane.f32.xlu0 %v1375
        %v1377 = vpop.xlane.xlu0 %1376
        %v1378 = vsel %vm1169, %v1368, -inf
        %1379 = vmax.xlane.f32.xlu0 %v1378
        %v1380 = vpop.xlane.xlu0 %1379
        %v1381 = vsub.f32 %v1365, %v1371
        %v1382 = vsub.f32 %v1366, %v1374
        %v1383 = vsub.f32 %v1367, %v1377
        %v1384 = vsub.f32 %v1368, %v1380
        %v1385 = vmul.f32 %v1381, 1.442695
        %v1386 = vpow.pop %v1385
        %v1387 = vmul.f32 %v1382, 1.442695
        %v1388 = vpow.pop %v1387
        %v1389 = vmul.f32 %v1383, 1.442695
        %v1390 = vpow.pop %v1389
        %v1391 = vmul.f32 %v1384, 1.442695
        %v1392 = vpow.pop %v1391
        %v1393 = vsel %vm1169, %v1386, 0.0
        %1394 = vadd.xlane.f32.xlu0 %v1393
        %v1395 = vpop.xlane.xlu0 %1394
        %v1396 = vsel %vm1169, %v1388, 0.0
        %1397 = vadd.xlane.f32.xlu0 %v1396
        %v1398 = vpop.xlane.xlu0 %1397
        %v1399 = vsel %vm1169, %v1390, 0.0
        %1400 = vadd.xlane.f32.xlu0 %v1399
        %v1401 = vpop.xlane.xlu0 %1400
        %v1402 = vsel %vm1169, %v1392, 0.0
        %1403 = vadd.xlane.f32.xlu0 %v1402
        %v1404 = vpop.xlane.xlu0 %1403
        %v1405 = vrcp.pop %v1395
        %v1406 = vrcp.pop %v1398
        %v1407 = vrcp.pop %v1401
        %v1408 = vrcp.pop %v1404
        %v1409 = vmul.f32 %v1386, %v1405
        %v1410 = vmul.f32 %v1388, %v1406
        %v1411 = vmul.f32 %v1390, %v1407
        %v1412 = vmul.f32 %v1392, %v1408
        %v1413 = vpack.c.bf16 %v1409, %v1409
        %v1414 = vpack.c.bf16 %v1410, %v1410
        %v1415 = vpack.c.bf16 %v1411, %v1411
        %v1416 = vpack.c.bf16 %v1412, %v1412
        %v1418 = vsel %vm1169, %v1413, 0
        %vm1420 = vcmask 1043456
        %v1422 = vsel %vm1420, %v1165, 0
        %1424 = vmatprep.subr.bf16.mxu0 0
        %1425 = vmatpush1.bf16.msra.mxu0 %v1422
        %1426 = vmatprep.subr.bf16.mxu0 0
        %1427 = vmatpush1.bf16.msra.mxu0 0
        %1428 = vmatprep.subr.bf16.mxu0 0
        %1429 = vmatpush1.bf16.msra.mxu0 0
        %1430 = vmatprep.subr.bf16.mxu0 0
        %1431 = vmatpush1.bf16.msra.mxu0 0
        %1432 = vmatprep.subr.bf16.mxu0 0
        %1433 = vmatpush1.bf16.msra.mxu0 0
        %1434 = vmatprep.subr.bf16.mxu0 0
        %1435 = vmatpush1.bf16.msra.mxu0 0
        %1436 = vmatprep.subr.bf16.mxu0 0
        %1437 = vmatpush1.bf16.msra.mxu0 0
        %1438 = vmatprep.subr.bf16.mxu0 0
        %1439 = vmatpush1.bf16.msra.mxu0 0
        %1440 = vmatprep.subr.bf16.mxu0 0
        %1441 = vmatpush1.bf16.msra.mxu0 0
        %1442 = vmatprep.subr.bf16.mxu0 0
        %1443 = vmatpush1.bf16.msra.mxu0 0
        %1444 = vmatprep.subr.bf16.mxu0 0
        %1445 = vmatpush1.bf16.msra.mxu0 0
        %1446 = vmatprep.subr.bf16.mxu0 0
        %1447 = vmatpush1.bf16.msra.mxu0 0
        %1448 = vmatprep.subr.bf16.mxu0 0
        %1449 = vmatpush1.bf16.msra.mxu0 0
        %1450 = vmatprep.subr.bf16.mxu0 0
        %1451 = vmatpush1.bf16.msra.mxu0 0
        %1452 = vmatprep.subr.bf16.mxu0 0
        %1453 = vmatpush1.bf16.msra.mxu0 0
        %1454 = vmatprep.subr.bf16.mxu0 0
        %1455 = vmatpush1.bf16.msra.mxu0 0
        %1456 = vmatprep.mubr.bf16.mxu0 0
        %1457 = vmatmul.mubr.bf16.gmra.mrb[0].mxu0 %v1418
        %v1458 = vpop.f32.mrb[0].mxu0
        %v1459 = vadd.f32 0.0, %v1458
        %v1460 = vpop.f32.mrb[0].mxu0
        %v1461 = vpop.f32.mrb[0].mxu0
        %v1462 = vpop.f32.mrb[0].mxu0
        %1463 = vdwg.mxu0
        %v1465 = vsel %vm1169, %v1414, 0
        %v1468 = vsel %vm1420, %v1166, 0
        %1470 = vmatprep.subr.bf16.mxu0 0
        %1471 = vmatpush1.bf16.msra.mxu0 %v1468
        %1472 = vmatprep.subr.bf16.mxu0 0
        %1473 = vmatpush1.bf16.msra.mxu0 0
        %1474 = vmatprep.subr.bf16.mxu0 0
        %1475 = vmatpush1.bf16.msra.mxu0 0
        %1476 = vmatprep.subr.bf16.mxu0 0
        %1477 = vmatpush1.bf16.msra.mxu0 0
        %1478 = vmatprep.subr.bf16.mxu0 0
        %1479 = vmatpush1.bf16.msra.mxu0 0
        %1480 = vmatprep.subr.bf16.mxu0 0
        %1481 = vmatpush1.bf16.msra.mxu0 0
        %1482 = vmatprep.subr.bf16.mxu0 0
        %1483 = vmatpush1.bf16.msra.mxu0 0
        %1484 = vmatprep.subr.bf16.mxu0 0
        %1485 = vmatpush1.bf16.msra.mxu0 0
        %1486 = vmatprep.subr.bf16.mxu0 0
        %1487 = vmatpush1.bf16.msra.mxu0 0
        %1488 = vmatprep.subr.bf16.mxu0 0
        %1489 = vmatpush1.bf16.msra.mxu0 0
        %1490 = vmatprep.subr.bf16.mxu0 0
        %1491 = vmatpush1.bf16.msra.mxu0 0
        %1492 = vmatprep.subr.bf16.mxu0 0
        %1493 = vmatpush1.bf16.msra.mxu0 0
        %1494 = vmatprep.subr.bf16.mxu0 0
        %1495 = vmatpush1.bf16.msra.mxu0 0
        %1496 = vmatprep.subr.bf16.mxu0 0
        %1497 = vmatpush1.bf16.msra.mxu0 0
        %1498 = vmatprep.subr.bf16.mxu0 0
        %1499 = vmatpush1.bf16.msra.mxu0 0
        %1500 = vmatprep.subr.bf16.mxu0 0
        %1501 = vmatpush1.bf16.msra.mxu0 0
        %1502 = vmatprep.mubr.bf16.mxu0 0
        %1503 = vmatmul.mubr.bf16.gmra.mrb[0].mxu0 %v1465
        %v1504 = vpop.f32.mrb[0].mxu0
        %v1505 = vadd.f32 0.0, %v1504
        %v1506 = vpop.f32.mrb[0].mxu0
        %v1507 = vpop.f32.mrb[0].mxu0
        %v1508 = vpop.f32.mrb[0].mxu0
        %1509 = vdwg.mxu0
        %v1511 = vsel %vm1169, %v1415, 0
        %v1514 = vsel %vm1420, %v1167, 0
        %1516 = vmatprep.subr.bf16.mxu0 0
        %1517 = vmatpush1.bf16.msra.mxu0 %v1514
        %1518 = vmatprep.subr.bf16.mxu0 0
        %1519 = vmatpush1.bf16.msra.mxu0 0
        %1520 = vmatprep.subr.bf16.mxu0 0
        %1521 = vmatpush1.bf16.msra.mxu0 0
        %1522 = vmatprep.subr.bf16.mxu0 0
        %1523 = vmatpush1.bf16.msra.mxu0 0
        %1524 = vmatprep.subr.bf16.mxu0 0
        %1525 = vmatpush1.bf16.msra.mxu0 0
        %1526 = vmatprep.subr.bf16.mxu0 0
        %1527 = vmatpush1.bf16.msra.mxu0 0
        %1528 = vmatprep.subr.bf16.mxu0 0
        %1529 = vmatpush1.bf16.msra.mxu0 0
        %1530 = vmatprep.subr.bf16.mxu0 0
        %1531 = vmatpush1.bf16.msra.mxu0 0
        %1532 = vmatprep.subr.bf16.mxu0 0
        %1533 = vmatpush1.bf16.msra.mxu0 0
        %1534 = vmatprep.subr.bf16.mxu0 0
        %1535 = vmatpush1.bf16.msra.mxu0 0
        %1536 = vmatprep.subr.bf16.mxu0 0
        %1537 = vmatpush1.bf16.msra.mxu0 0
        %1538 = vmatprep.subr.bf16.mxu0 0
        %1539 = vmatpush1.bf16.msra.mxu0 0
        %1540 = vmatprep.subr.bf16.mxu0 0
        %1541 = vmatpush1.bf16.msra.mxu0 0
        %1542 = vmatprep.subr.bf16.mxu0 0
        %1543 = vmatpush1.bf16.msra.mxu0 0
        %1544 = vmatprep.subr.bf16.mxu0 0
        %1545 = vmatpush1.bf16.msra.mxu0 0
        %1546 = vmatprep.subr.bf16.mxu0 0
        %1547 = vmatpush1.bf16.msra.mxu0 0
        %1548 = vmatprep.mubr.bf16.mxu0 0
        %1549 = vmatmul.mubr.bf16.gmra.mrb[0].mxu0 %v1511
        %v1550 = vpop.f32.mrb[0].mxu0
        %v1551 = vadd.f32 0.0, %v1550
        %v1552 = vpop.f32.mrb[0].mxu0
        %v1553 = vpop.f32.mrb[0].mxu0
        %v1554 = vpop.f32.mrb[0].mxu0
        %1555 = vdwg.mxu0
        %v1557 = vsel %vm1169, %v1416, 0
        %v1560 = vsel %vm1420, %v1168, 0
        %1562 = vmatprep.subr.bf16.mxu0 0
        %1563 = vmatpush1.bf16.msra.mxu0 %v1560
        %1564 = vmatprep.subr.bf16.mxu0 0
        %1565 = vmatpush1.bf16.msra.mxu0 0
        %1566 = vmatprep.subr.bf16.mxu0 0
        %1567 = vmatpush1.bf16.msra.mxu0 0
        %1568 = vmatprep.subr.bf16.mxu0 0
        %1569 = vmatpush1.bf16.msra.mxu0 0
        %1570 = vmatprep.subr.bf16.mxu0 0
        %1571 = vmatpush1.bf16.msra.mxu0 0
        %1572 = vmatprep.subr.bf16.mxu0 0
        %1573 = vmatpush1.bf16.msra.mxu0 0
        %1574 = vmatprep.subr.bf16.mxu0 0
        %1575 = vmatpush1.bf16.msra.mxu0 0
        %1576 = vmatprep.subr.bf16.mxu0 0
        %1577 = vmatpush1.bf16.msra.mxu0 0
        %1578 = vmatprep.subr.bf16.mxu0 0
        %1579 = vmatpush1.bf16.msra.mxu0 0
        %1580 = vmatprep.subr.bf16.mxu0 0
        %1581 = vmatpush1.bf16.msra.mxu0 0
        %1582 = vmatprep.subr.bf16.mxu0 0
        %1583 = vmatpush1.bf16.msra.mxu0 0
        %1584 = vmatprep.subr.bf16.mxu0 0
        %1585 = vmatpush1.bf16.msra.mxu0 0
        %1586 = vmatprep.subr.bf16.mxu0 0
        %1587 = vmatpush1.bf16.msra.mxu0 0
        %1588 = vmatprep.subr.bf16.mxu0 0
        %1589 = vmatpush1.bf16.msra.mxu0 0
        %1590 = vmatprep.subr.bf16.mxu0 0
        %1591 = vmatpush1.bf16.msra.mxu0 0
        %1592 = vmatprep.subr.bf16.mxu0 0
        %1593 = vmatpush1.bf16.msra.mxu0 0
        %1594 = vmatprep.mubr.bf16.mxu0 0
        %1595 = vmatmul.mubr.bf16.gmra.mrb[0].mxu0 %v1557
        %v1596 = vpop.f32.mrb[0].mxu0
        %v1597 = vadd.f32 0.0, %v1596
        %v1598 = vpop.f32.mrb[0].mxu0
        %v1599 = vpop.f32.mrb[0].mxu0
        %v1600 = vpop.f32.mrb[0].mxu0
        %1601 = vdwg.mxu0
        %v1602 = vcombine.low %v1459, %v1551
        %v1603 = vcombine.high %v1459, %v1551
        %v1605 = vunpack.c.l.s4 1983009808
        %v1606 = vunpack.c.0.s8 %v1605
        %v1607 = vlaneseq
        %v1608 = vshrl.u32 %v1607, 7
        %v1609 = vsub.s32 %v1606, %v1608
        %v1610 = vrot.slane %v1602, %v1609
        %v1612 = vunpack.c.l.s4 1983009808
        %v1613 = vunpack.c.0.s8 %v1612
        %v1614 = vlaneseq
        %v1615 = vshrl.u32 %v1614, 7
        %v1616 = vsub.s32 %v1613, %v1615
        %v1617 = vrot.slane %v1603, %v1616
        %v1618 = vcombine.low %v1505, %v1597
        %v1619 = vcombine.high %v1505, %v1597
        %v1621 = vunpack.c.l.s4 1983009808
        %v1622 = vunpack.c.0.s8 %v1621
        %v1623 = vlaneseq
        %v1624 = vshrl.u32 %v1623, 7
        %v1625 = vsub.s32 %v1622, %v1624
        %v1626 = vrot.slane %v1618, %v1625
        %v1628 = vunpack.c.l.s4 1983009808
        %v1629 = vunpack.c.0.s8 %v1628
        %v1630 = vlaneseq
        %v1631 = vshrl.u32 %v1630, 7
        %v1632 = vsub.s32 %v1629, %v1631
        %v1633 = vrot.slane %v1619, %v1632
        %v1634 = vcombine.low %v1610, %v1626
        %v1635 = vcombine.high %v1610, %v1626
        %v1637 = vunpack.c.l.s4 1934713408
        %v1638 = vunpack.c.0.s8 %v1637
        %v1639 = vlaneseq
        %v1640 = vshrl.u32 %v1639, 7
        %v1641 = vsub.s32 %v1638, %v1640
        %v1642 = vrot.slane %v1634, %v1641
        %v1644 = vunpack.c.l.s4 1934713408
        %v1645 = vunpack.c.0.s8 %v1644
        %v1646 = vlaneseq
        %v1647 = vshrl.u32 %v1646, 7
        %v1648 = vsub.s32 %v1645, %v1647
        %v1649 = vrot.slane %v1635, %v1648
        %v1650 = vcombine.low %v1617, %v1633
        %v1651 = vcombine.high %v1617, %v1633
        %v1653 = vunpack.c.l.s4 1934713408
        %v1654 = vunpack.c.0.s8 %v1653
        %v1655 = vlaneseq
        %v1656 = vshrl.u32 %v1655, 7
        %v1657 = vsub.s32 %v1654, %v1656
        %v1658 = vrot.slane %v1650, %v1657
        %v1660 = vunpack.c.l.s4 1934713408
        %v1661 = vunpack.c.0.s8 %v1660
        %v1662 = vlaneseq
        %v1663 = vshrl.u32 %v1662, 7
        %v1664 = vsub.s32 %v1661, %v1663
        %v1665 = vrot.slane %v1651, %v1664
        %v1666 = vcombine.high %v1642, 0.0
        %v1667 = vcombine.high %v1649, 0.0
        %v1668 = vcombine.high %v1658, 0.0
        %v1669 = vcombine.high %v1665, 0.0
        %v1670 = vcombine.low %v1642, %v1649
        %v1672 = vunpack.c.l.s4 1983009808
        %v1673 = vunpack.c.0.s8 %v1672
        %v1674 = vlaneseq
        %v1675 = vshrl.u32 %v1674, 7
        %v1676 = vsub.s32 %v1673, %v1675
        %v1677 = vrot.slane %v1670, %v1676
        %v1678 = vcombine.low %v1666, %v1667
        %v1680 = vunpack.c.l.s4 1983009808
        %v1681 = vunpack.c.0.s8 %v1680
        %v1682 = vlaneseq
        %v1683 = vshrl.u32 %v1682, 7
        %v1684 = vsub.s32 %v1681, %v1683
        %v1685 = vrot.slane %v1678, %v1684
        %v1686 = vcombine.low %v1658, %v1665
        %v1688 = vunpack.c.l.s4 1983009808
        %v1689 = vunpack.c.0.s8 %v1688
        %v1690 = vlaneseq
        %v1691 = vshrl.u32 %v1690, 7
        %v1692 = vsub.s32 %v1689, %v1691
        %v1693 = vrot.slane %v1686, %v1692
        %v1694 = vcombine.low %v1668, %v1669
        %v1696 = vunpack.c.l.s4 1983009808
        %v1697 = vunpack.c.0.s8 %v1696
        %v1698 = vlaneseq
        %v1699 = vshrl.u32 %v1698, 7
        %v1700 = vsub.s32 %v1697, %v1699
        %v1701 = vrot.slane %v1694, %v1700
        %v1702 = vcombine.low %v1677, %v1685
        %v1703 = vcombine.high %v1677, %v1685
        %v1705 = vunpack.c.l.s4 1934713408
        %v1706 = vunpack.c.0.s8 %v1705
        %v1707 = vlaneseq
        %v1708 = vshrl.u32 %v1707, 7
        %v1709 = vsub.s32 %v1706, %v1708
        %v1710 = vrot.slane %v1702, %v1709
        %v1712 = vunpack.c.l.s4 1934713408
        %v1713 = vunpack.c.0.s8 %v1712
        %v1714 = vlaneseq
        %v1715 = vshrl.u32 %v1714, 7
        %v1716 = vsub.s32 %v1713, %v1715
        %v1717 = vrot.slane %v1703, %v1716
        %v1718 = vcombine.low %v1693, %v1701
        %v1719 = vcombine.high %v1693, %v1701
        %v1721 = vunpack.c.l.s4 1934713408
        %v1722 = vunpack.c.0.s8 %v1721
        %v1723 = vlaneseq
        %v1724 = vshrl.u32 %v1723, 7
        %v1725 = vsub.s32 %v1722, %v1724
        %v1726 = vrot.slane %v1718, %v1725
        %v1728 = vunpack.c.l.s4 1934713408
        %v1729 = vunpack.c.0.s8 %v1728
        %v1730 = vlaneseq
        %v1731 = vshrl.u32 %v1730, 7
        %v1732 = vsub.s32 %v1729, %v1731
        %v1733 = vrot.slane %v1719, %v1732
        %v1734 = vcombine.low %v1710, %v1726
        %v1735 = vcombine.high %v1710, %v1726
        %v1736 = vcombine.low %v1717, %v1733
        %v1737 = vcombine.high %v1717, %v1733
        %1739 = vrot.lane.b32.xlu0 %v1735, 8
        %v1740 = vpop.permute.xlu0 %1739
        %1743 = vrot.lane.b32.xlu0 %v1736, 16
        %v1744 = vpop.permute.xlu0 %1743
        %1747 = vrot.lane.b32.xlu0 %v1737, 24
        %v1748 = vpop.permute.xlu0 %1747
        %v1750 = vsel %vm1169, %v1734, %v1740
        %vm1751 = vcmask 130048
        %v1752 = vsel %vm1751, %v1750, %v1744
        %vm1753 = vcmask 195584
        %v1754 = vsel %vm1753, %v1752, %v1748
        %v1755 = vpack.c.bf16 %v1754, %v1754
        %v1756 = vld [vmem:[#allocation12] sm:$0xf]
        %v1757 = vld [vmem:[#allocation12 + $0x4] sm:$0xf]
        %v1758 = vld [vmem:[#allocation12 + $0x8] sm:$0xf]
        %v1759 = vld [vmem:[#allocation12 + $0xc] sm:$0xf]
        %v1760 = vld [vmem:[#allocation14] sm:$0x1]
        %v1762 = vlaneseq
        %v1763 = vshrl.u32 %v1762, 7
        %v1764 = vsub.s32 0, %v1763
        %v1765 = vrot.slane %v1760, %v1764
        %v1771 = vunpack.c.l.b16 %v1756
        %v1772 = vunpack.c.l.b16 %v1757
        %v1773 = vunpack.c.l.b16 %v1758
        %v1774 = vunpack.c.l.b16 %v1759
        %v1775 = vpack.c.b16 %v1772, %v1771
        %v1776 = vpack.c.b16 %v1774, %v1773
        %v1780 = vsel %vm619, %v1755, 0
        %1782 = vmatprep.subr.bf16.mxu0 0
        %1783 = vmatpush1.bf16.msra.mxu0 %v1775
        %1784 = vmatprep.subr.bf16.mxu0 0
        %1785 = vmatpush1.bf16.msra.mxu0 %v1776
        %1786 = vmatprep.subr.bf16.mxu0 0
        %1787 = vmatpush1.bf16.msra.mxu0 0
        %1788 = vmatprep.subr.bf16.mxu0 0
        %1789 = vmatpush1.bf16.msra.mxu0 0
        %1790 = vmatprep.subr.bf16.mxu0 0
        %1791 = vmatpush1.bf16.msra.mxu0 0
        %1792 = vmatprep.subr.bf16.mxu0 0
        %1793 = vmatpush1.bf16.msra.mxu0 0
        %1794 = vmatprep.subr.bf16.mxu0 0
        %1795 = vmatpush1.bf16.msra.mxu0 0
        %1796 = vmatprep.subr.bf16.mxu0 0
        %1797 = vmatpush1.bf16.msra.mxu0 0
        %1798 = vmatprep.subr.bf16.mxu0 0
        %1799 = vmatpush1.bf16.msra.mxu0 0
        %1800 = vmatprep.subr.bf16.mxu0 0
        %1801 = vmatpush1.bf16.msra.mxu0 0
        %1802 = vmatprep.subr.bf16.mxu0 0
        %1803 = vmatpush1.bf16.msra.mxu0 0
        %1804 = vmatprep.subr.bf16.mxu0 0
        %1805 = vmatpush1.bf16.msra.mxu0 0
        %1806 = vmatprep.subr.bf16.mxu0 0
        %1807 = vmatpush1.bf16.msra.mxu0 0
        %1808 = vmatprep.subr.bf16.mxu0 0
        %1809 = vmatpush1.bf16.msra.mxu0 0
        %1810 = vmatprep.subr.bf16.mxu0 0
        %1811 = vmatpush1.bf16.msra.mxu0 0
        %1812 = vmatprep.subr.bf16.mxu0 0
        %1813 = vmatpush1.bf16.msra.mxu0 0
        %1814 = vmatprep.mubr.bf16.mxu0 0
        %1815 = vmatmul.mubr.bf16.gmra.mrb[0].mxu0 %v1780
        %v1816 = vpop.f32.mrb[0].mxu0
        %v1817 = vadd.f32 %v1765, %v1816
        %v1818 = vpop.f32.mrb[0].mxu0
        %v1819 = vpop.f32.mrb[0].mxu0
        %v1820 = vpop.f32.mrb[0].mxu0
        %1821 = vdwg.mxu0
        %v1822 = vadd.f32 %v616, %v1817
        %v1823 = vld [vmem:[%s536] sm:$0xff]
        %v1824 = vld [vmem:[%s536 + $0x8] sm:$0xff]
        %v1825 = vld [vmem:[%s536 + $0x10] sm:$0xff]
        %v1826 = vsel %vm619, %v1823, 0.0
        %v1827 = vsel %vm619, %v1824, 0.0
        %v1828 = vadd.f32 %v1826, %v1827
        %v1829 = vsel %vm619, %v1825, 0.0
        %v1830 = vadd.f32 %v1828, %v1829
        %v1831 = vadd.f32 %v1822, %v1830
        %v1832 = vld [vmem:[#allocation8] sm:$0x1]
        %v1833 = vld [vmem:[#allocation9] sm:$0x1]
        %v1834 = vsel %vm619, %v1831, 0.0
        %1835 = vadd.xlane.f32.xlu0 %v1834
        %v1836 = vpop.xlane.xlu0 %1835
        %v1837 = vmul.f32 %v1836, %v623
        %v1838 = vsub.f32 %v1831, %v1837
        %v1839 = vmul.f32 %v1838, %v1838
        %v1840 = vsel %vm619, %v1839, 0.0
        %1841 = vadd.xlane.f32.xlu0 %v1840
        %v1842 = vpop.xlane.xlu0 %1841
        %v1843 = vmul.f32 %v1842, %v623
        %v1844 = vadd.f32 %v1843, 1e-05
        %v1845 = vrsqrt.pop %v1844
        %v1846 = vmul.f32 %v1838, %v1845
        %v1848 = vlaneseq
        %v1849 = vshrl.u32 %v1848, 7
        %v1850 = vsub.s32 0, %v1849
        %v1851 = vrot.slane %v1832, %v1850
        %v1853 = vmul.f32 %v1846, %v1851
        %v1855 = vlaneseq
        %v1856 = vshrl.u32 %v1855, 7
        %v1857 = vsub.s32 0, %v1856
        %v1858 = vrot.slane %v1833, %v1857
        %v1860 = vadd.f32 %v1853, %v1858
        %1862 = vrot.lane.b32.xlu0 %v1860, 112
        %v1863 = vpop.permute.xlu0 %1862
        %v1865 = vcombine.high %v1860, 0.0
        %v1867 = vunpack.c.l.s4 1983009808
        %v1868 = vunpack.c.0.s8 %v1867
        %v1869 = vlaneseq
        %v1870 = vshrl.u32 %v1869, 7
        %v1871 = vsub.s32 %v1868, %v1870
        %v1872 = vrot.slane %v1860, %v1871
        %v1874 = vunpack.c.l.s4 1983009808
        %v1875 = vunpack.c.0.s8 %v1874
        %v1876 = vlaneseq
        %v1877 = vshrl.u32 %v1876, 7
        %v1878 = vsub.s32 %v1875, %v1877
        %v1879 = vrot.slane %v1865, %v1878
        %v1880 = vcombine.high %v1863, 0.0
        %v1882 = vunpack.c.l.s4 1983009808
        %v1883 = vunpack.c.0.s8 %v1882
        %v1884 = vlaneseq
        %v1885 = vshrl.u32 %v1884, 7
        %v1886 = vsub.s32 %v1883, %v1885
        %v1887 = vrot.slane %v1863, %v1886
        %v1889 = vunpack.c.l.s4 1983009808
        %v1890 = vunpack.c.0.s8 %v1889
        %v1891 = vlaneseq
        %v1892 = vshrl.u32 %v1891, 7
        %v1893 = vsub.s32 %v1890, %v1892
        %v1894 = vrot.slane %v1880, %v1893
        %v1895 = vcombine.low %v1872, %v1887
        %v1896 = vcombine.high %v1872, %v1887
        %v1898 = vunpack.c.l.s4 1934713408
        %v1899 = vunpack.c.0.s8 %v1898
        %v1900 = vlaneseq
        %v1901 = vshrl.u32 %v1900, 7
        %v1902 = vsub.s32 %v1899, %v1901
        %v1903 = vrot.slane %v1895, %v1902
        %v1905 = vunpack.c.l.s4 1934713408
        %v1906 = vunpack.c.0.s8 %v1905
        %v1907 = vlaneseq
        %v1908 = vshrl.u32 %v1907, 7
        %v1909 = vsub.s32 %v1906, %v1908
        %v1910 = vrot.slane %v1896, %v1909
        %v1911 = vcombine.low %v1879, %v1894
        %v1912 = vcombine.high %v1879, %v1894
        %v1914 = vunpack.c.l.s4 1934713408
        %v1915 = vunpack.c.0.s8 %v1914
        %v1916 = vlaneseq
        %v1917 = vshrl.u32 %v1916, 7
        %v1918 = vsub.s32 %v1915, %v1917
        %v1919 = vrot.slane %v1911, %v1918
        %v1921 = vunpack.c.l.s4 1934713408
        %v1922 = vunpack.c.0.s8 %v1921
        %v1923 = vlaneseq
        %v1924 = vshrl.u32 %v1923, 7
        %v1925 = vsub.s32 %v1922, %v1924
        %v1926 = vrot.slane %v1912, %v1925
        %v1927 = vcombine.high %v1903, 0.0
        %v1928 = vcombine.high %v1910, 0.0
        %v1929 = vcombine.high %v1919, 0.0
        %v1930 = vcombine.high %v1926, 0.0
        %v1931 = vcombine.low %v1903, %v1910
        %v1933 = vunpack.c.l.s4 1983009808
        %v1934 = vunpack.c.0.s8 %v1933
        %v1935 = vlaneseq
        %v1936 = vshrl.u32 %v1935, 7
        %v1937 = vsub.s32 %v1934, %v1936
        %v1938 = vrot.slane %v1931, %v1937
        %v1939 = vcombine.low %v1927, %v1928
        %v1941 = vunpack.c.l.s4 1983009808
        %v1942 = vunpack.c.0.s8 %v1941
        %v1943 = vlaneseq
        %v1944 = vshrl.u32 %v1943, 7
        %v1945 = vsub.s32 %v1942, %v1944
        %v1946 = vrot.slane %v1939, %v1945
        %v1947 = vcombine.low %v1919, %v1926
        %v1949 = vunpack.c.l.s4 1983009808
        %v1950 = vunpack.c.0.s8 %v1949
        %v1951 = vlaneseq
        %v1952 = vshrl.u32 %v1951, 7
        %v1953 = vsub.s32 %v1950, %v1952
        %v1954 = vrot.slane %v1947, %v1953
        %v1955 = vcombine.low %v1929, %v1930
        %v1957 = vunpack.c.l.s4 1983009808
        %v1958 = vunpack.c.0.s8 %v1957
        %v1959 = vlaneseq
        %v1960 = vshrl.u32 %v1959, 7
        %v1961 = vsub.s32 %v1958, %v1960
        %v1962 = vrot.slane %v1955, %v1961
        %v1963 = vcombine.low %v1938, %v1946
        %v1965 = vunpack.c.l.s4 1934713408
        %v1966 = vunpack.c.0.s8 %v1965
        %v1967 = vlaneseq
        %v1968 = vshrl.u32 %v1967, 7
        %v1969 = vsub.s32 %v1966, %v1968
        %v1970 = vrot.slane %v1963, %v1969
        %v1971 = vcombine.low %v1954, %v1962
        %v1973 = vunpack.c.l.s4 1934713408
        %v1974 = vunpack.c.0.s8 %v1973
        %v1975 = vlaneseq
        %v1976 = vshrl.u32 %v1975, 7
        %v1977 = vsub.s32 %v1974, %v1976
        %v1978 = vrot.slane %v1971, %v1977
        %v1979 = vcombine.low %v1970, %v1978
        %v1980 = vcombine.high %v1970, %v1978
        %v1981 = vpack.c.bf16 %v1979, %v1979
        %v1982 = vpack.c.bf16 %v1980, %v1980
        %v1983 = vld [vmem:[%s10] sm:$0xf]
        %v1984 = vld [vmem:[%s10 + $0x4] sm:$0xf]
        %v1985 = vld [vmem:[%s10 + $0x8] sm:$0xf]
        %v1986 = vld [vmem:[%s10 + $0xc] sm:$0xf]
        %v1987 = vld [vmem:[%s11] sm:$0x1]
        %v1988 = vld [vmem:[%s11 + $0x1] sm:$0x1]
        %v1991 = vlaneseq
        %v1992 = vshrl.u32 %v1991, 7
        %v1993 = vsub.s32 0, %v1992
        %v1994 = vrot.slane %v1987, %v1993
        %v1995 = vlaneseq
        %v1996 = vshrl.u32 %v1995, 7
        %v1997 = vsub.s32 0, %v1996
        %v1998 = vrot.slane %v1988, %v1997
        %v2003 = vunpack.c.l.b16 %v1983
        %v2004 = vunpack.c.l.b16 %v1984
        %v2005 = vpack.c.b16 %v2004, %v2003
        %v2008 = vsel %vm1751, %v1981, 0
        %2010 = vmatprep.subr.bf16.mxu0 0
        %2011 = vmatpush1.bf16.msra.mxu0 %v2005
        %2012 = vmatprep.subr.bf16.mxu0 0
        %2013 = vmatpush1.bf16.msra.mxu0 0
        %2014 = vmatprep.subr.bf16.mxu0 0
        %2015 = vmatpush1.bf16.msra.mxu0 0
        %2016 = vmatprep.subr.bf16.mxu0 0
        %2017 = vmatpush1.bf16.msra.mxu0 0
        %2018 = vmatprep.subr.bf16.mxu0 0
        %2019 = vmatpush1.bf16.msra.mxu0 0
        %2020 = vmatprep.subr.bf16.mxu0 0
        %2021 = vmatpush1.bf16.msra.mxu0 0
        %2022 = vmatprep.subr.bf16.mxu0 0
        %2023 = vmatpush1.bf16.msra.mxu0 0
        %2024 = vmatprep.subr.bf16.mxu0 0
        %2025 = vmatpush1.bf16.msra.mxu0 0
        %2026 = vmatprep.subr.bf16.mxu0 0
        %2027 = vmatpush1.bf16.msra.mxu0 0
        %2028 = vmatprep.subr.bf16.mxu0 0
        %2029 = vmatpush1.bf16.msra.mxu0 0
        %2030 = vmatprep.subr.bf16.mxu0 0
        %2031 = vmatpush1.bf16.msra.mxu0 0
        %2032 = vmatprep.subr.bf16.mxu0 0
        %2033 = vmatpush1.bf16.msra.mxu0 0
        %2034 = vmatprep.subr.bf16.mxu0 0
        %2035 = vmatpush1.bf16.msra.mxu0 0
        %2036 = vmatprep.subr.bf16.mxu0 0
        %2037 = vmatpush1.bf16.msra.mxu0 0
        %2038 = vmatprep.subr.bf16.mxu0 0
        %2039 = vmatpush1.bf16.msra.mxu0 0
        %2040 = vmatprep.subr.bf16.mxu0 0
        %2041 = vmatpush1.bf16.msra.mxu0 0
        %2042 = vmatprep.mubr.bf16.mxu0 0
        %2043 = vmatmul.mubr.bf16.gmra.mrb[0].mxu0 %v2008
        %v2044 = vpop.f32.mrb[0].mxu0
        %v2045 = vadd.f32 %v1994, %v2044
        %v2046 = vpop.f32.mrb[0].mxu0
        %v2047 = vpop.f32.mrb[0].mxu0
        %v2048 = vpop.f32.mrb[0].mxu0
        %2049 = vdwg.mxu0
        %v2052 = vunpack.c.l.b16 %v1985
        %v2053 = vunpack.c.l.b16 %v1986
        %v2054 = vpack.c.b16 %v2053, %v2052
        %v2057 = vsel %vm1751, %v1982, 0
        %2059 = vmatprep.subr.bf16.mxu0 0
        %2060 = vmatpush1.bf16.msra.mxu0 %v2054
        %2061 = vmatprep.subr.bf16.mxu0 0
        %2062 = vmatpush1.bf16.msra.mxu0 0
        %2063 = vmatprep.subr.bf16.mxu0 0
        %2064 = vmatpush1.bf16.msra.mxu0 0
        %2065 = vmatprep.subr.bf16.mxu0 0
        %2066 = vmatpush1.bf16.msra.mxu0 0
        %2067 = vmatprep.subr.bf16.mxu0 0
        %2068 = vmatpush1.bf16.msra.mxu0 0
        %2069 = vmatprep.subr.bf16.mxu0 0
        %2070 = vmatpush1.bf16.msra.mxu0 0
        %2071 = vmatprep.subr.bf16.mxu0 0
        %2072 = vmatpush1.bf16.msra.mxu0 0
        %2073 = vmatprep.subr.bf16.mxu0 0
        %2074 = vmatpush1.bf16.msra.mxu0 0
        %2075 = vmatprep.subr.bf16.mxu0 0
        %2076 = vmatpush1.bf16.msra.mxu0 0
        %2077 = vmatprep.subr.bf16.mxu0 0
        %2078 = vmatpush1.bf16.msra.mxu0 0
        %2079 = vmatprep.subr.bf16.mxu0 0
        %2080 = vmatpush1.bf16.msra.mxu0 0
        %2081 = vmatprep.subr.bf16.mxu0 0
        %2082 = vmatpush1.bf16.msra.mxu0 0
        %2083 = vmatprep.subr.bf16.mxu0 0
        %2084 = vmatpush1.bf16.msra.mxu0 0
        %2085 = vmatprep.subr.bf16.mxu0 0
        %2086 = vmatpush1.bf16.msra.mxu0 0
        %2087 = vmatprep.subr.bf16.mxu0 0
        %2088 = vmatpush1.bf16.msra.mxu0 0
        %2089 = vmatprep.subr.bf16.mxu0 0
        %2090 = vmatpush1.bf16.msra.mxu0 0
        %2091 = vmatprep.mubr.bf16.mxu0 0
        %2092 = vmatmul.mubr.bf16.gmra.mrb[0].mxu0 %v2057
        %v2093 = vpop.f32.mrb[0].mxu0
        %v2094 = vadd.f32 %v1998, %v2093
        %v2095 = vpop.f32.mrb[0].mxu0
        %v2096 = vpop.f32.mrb[0].mxu0
        %v2097 = vpop.f32.mrb[0].mxu0
        %2098 = vdwg.mxu0
        %v2099 = vmul.f32 %v2045, %v2045
        %v2100 = vmul.f32 %v2094, %v2094
        %v2101 = vmul.f32 %v2045, %v2099
        %v2102 = vmul.f32 %v2094, %v2100
        %v2103 = vmul.f32 %v2101, 0.044715
        %v2104 = vmul.f32 %v2102, 0.044715
        %v2105 = vadd.f32 %v2045, %v2103
        %v2106 = vadd.f32 %v2094, %v2104
        %v2107 = vmul.f32 %v2105, 0.7978846
        %v2108 = vmul.f32 %v2106, 0.7978846
        %v2109 = vtanh.pop %v2107
        %v2110 = vtanh.pop %v2108
        %v2111 = vadd.f32 %v2109, 1.0
        %v2112 = vadd.f32 %v2110, 1.0
        %v2113 = vmul.f32 %v2111, 0.5
        %v2114 = vmul.f32 %v2112, 0.5
        %v2115 = vmul.f32 %v2045, %v2113
        %v2116 = vmul.f32 %v2094, %v2114
        %v2117 = vpack.c.bf16 %v2115, %v2115
        %v2118 = vpack.c.bf16 %v2116, %v2116
        %v2119 = vld [vmem:[%s12] sm:$0xf]
        %v2120 = vld [vmem:[%s12 + $0x4] sm:$0xf]
        %v2121 = vld [vmem:[%s12 + $0x8] sm:$0xf]
        %v2122 = vld [vmem:[%s12 + $0xc] sm:$0xf]
        %v2123 = vld [vmem:[%s12 + $0x10] sm:$0xf]
        %v2124 = vld [vmem:[%s12 + $0x14] sm:$0xf]
        %v2125 = vld [vmem:[%s12 + $0x18] sm:$0xf]
        %v2126 = vld [vmem:[%s12 + $0x1c] sm:$0xf]
        %v2127 = vld [vmem:[%s12 + $0x20] sm:$0xf]
        %v2128 = vld [vmem:[%s12 + $0x24] sm:$0xf]
        %v2129 = vld [vmem:[%s12 + $0x28] sm:$0xf]
        %v2130 = vld [vmem:[%s12 + $0x2c] sm:$0xf]
        %v2131 = vld [vmem:[%s12 + $0x30] sm:$0xf]
        %v2132 = vld [vmem:[%s12 + $0x34] sm:$0xf]
        %v2133 = vld [vmem:[%s12 + $0x38] sm:$0xf]
        %v2134 = vld [vmem:[%s12 + $0x3c] sm:$0xf]
        %v2135 = vld [vmem:[%s13] sm:$0x1]
        %v2136 = vld [vmem:[%s13 + $0x1] sm:$0x1]
        %v2139 = vlaneseq
        %v2140 = vshrl.u32 %v2139, 7
        %v2141 = vsub.s32 0, %v2140
        %v2142 = vrot.slane %v2135, %v2141
        %v2143 = vlaneseq
        %v2144 = vshrl.u32 %v2143, 7
        %v2145 = vsub.s32 0, %v2144
        %v2146 = vrot.slane %v2136, %v2145
        %v2157 = vunpack.c.l.b16 %v2119
        %v2158 = vunpack.c.l.b16 %v2120
        %v2159 = vunpack.c.l.b16 %v2121
        %v2160 = vunpack.c.l.b16 %v2122
        %v2161 = vunpack.c.l.b16 %v2123
        %v2162 = vunpack.c.l.b16 %v2124
        %v2163 = vunpack.c.l.b16 %v2125
        %v2164 = vunpack.c.l.b16 %v2126
        %v2165 = vpack.c.b16 %v2158, %v2157
        %v2166 = vpack.c.b16 %v2160, %v2159
        %v2167 = vpack.c.b16 %v2162, %v2161
        %v2168 = vpack.c.b16 %v2164, %v2163
        %vm2173 = vcmask 523264
        %v2175 = vsel %vm2173, %v2117, 0
        %2177 = vmatprep.subr.bf16.mxu0 0
        %2178 = vmatpush1.bf16.msra.mxu0 %v2165
        %2179 = vmatprep.subr.bf16.mxu0 0
        %2180 = vmatpush1.bf16.msra.mxu0 %v2166
        %2181 = vmatprep.subr.bf16.mxu0 0
        %2182 = vmatpush1.bf16.msra.mxu0 %v2167
        %2183 = vmatprep.subr.bf16.mxu0 0
        %2184 = vmatpush1.bf16.msra.mxu0 %v2168
        %2185 = vmatprep.subr.bf16.mxu0 0
        %2186 = vmatpush1.bf16.msra.mxu0 0
        %2187 = vmatprep.subr.bf16.mxu0 0
        %2188 = vmatpush1.bf16.msra.mxu0 0
        %2189 = vmatprep.subr.bf16.mxu0 0
        %2190 = vmatpush1.bf16.msra.mxu0 0
        %2191 = vmatprep.subr.bf16.mxu0 0
        %2192 = vmatpush1.bf16.msra.mxu0 0
        %2193 = vmatprep.subr.bf16.mxu0 0
        %2194 = vmatpush1.bf16.msra.mxu0 0
        %2195 = vmatprep.subr.bf16.mxu0 0
        %2196 = vmatpush1.bf16.msra.mxu0 0
        %2197 = vmatprep.subr.bf16.mxu0 0
        %2198 = vmatpush1.bf16.msra.mxu0 0
        %2199 = vmatprep.subr.bf16.mxu0 0
        %2200 = vmatpush1.bf16.msra.mxu0 0
        %2201 = vmatprep.subr.bf16.mxu0 0
        %2202 = vmatpush1.bf16.msra.mxu0 0
        %2203 = vmatprep.subr.bf16.mxu0 0
        %2204 = vmatpush1.bf16.msra.mxu0 0
        %2205 = vmatprep.subr.bf16.mxu0 0
        %2206 = vmatpush1.bf16.msra.mxu0 0
        %2207 = vmatprep.subr.bf16.mxu0 0
        %2208 = vmatpush1.bf16.msra.mxu0 0
        %2209 = vmatprep.mubr.bf16.mxu0 0
        %2210 = vmatmul.mubr.bf16.gmra.mrb[0].mxu0 %v2175
        %v2211 = vpop.f32.mrb[0].mxu0
        %v2212 = vadd.f32 %v2142, %v2211
        %v2213 = vpop.f32.mrb[0].mxu0
        %v2214 = vpop.f32.mrb[0].mxu0
        %v2215 = vpop.f32.mrb[0].mxu0
        %2216 = vdwg.mxu0
        %v2225 = vunpack.c.l.b16 %v2127
        %v2226 = vunpack.c.l.b16 %v2128
        %v2227 = vunpack.c.l.b16 %v2129
        %v2228 = vunpack.c.l.b16 %v2130
        %v2229 = vunpack.c.l.b16 %v2131
        %v2230 = vunpack.c.l.b16 %v2132
        %v2231 = vunpack.c.l.b16 %v2133
        %v2232 = vunpack.c.l.b16 %v2134
        %v2233 = vpack.c.b16 %v2226, %v2225
        %v2234 = vpack.c.b16 %v2228, %v2227
        %v2235 = vpack.c.b16 %v2230, %v2229
        %v2236 = vpack.c.b16 %v2232, %v2231
        %v2242 = vsel %vm2173, %v2118, 0
        %2244 = vmatprep.subr.bf16.mxu0 0
        %2245 = vmatpush1.bf16.msra.mxu0 %v2233
        %2246 = vmatprep.subr.bf16.mxu0 0
        %2247 = vmatpush1.bf16.msra.mxu0 %v2234
        %2248 = vmatprep.subr.bf16.mxu0 0
        %2249 = vmatpush1.bf16.msra.mxu0 %v2235
        %2250 = vmatprep.subr.bf16.mxu0 0
        %2251 = vmatpush1.bf16.msra.mxu0 %v2236
        %2252 = vmatprep.subr.bf16.mxu0 0
        %2253 = vmatpush1.bf16.msra.mxu0 0
        %2254 = vmatprep.subr.bf16.mxu0 0
        %2255 = vmatpush1.bf16.msra.mxu0 0
        %2256 = vmatprep.subr.bf16.mxu0 0
        %2257 = vmatpush1.bf16.msra.mxu0 0
        %2258 = vmatprep.subr.bf16.mxu0 0
        %2259 = vmatpush1.bf16.msra.mxu0 0
        %2260 = vmatprep.subr.bf16.mxu0 0
        %2261 = vmatpush1.bf16.msra.mxu0 0
        %2262 = vmatprep.subr.bf16.mxu0 0
        %2263 = vmatpush1.bf16.msra.mxu0 0
        %2264 = vmatprep.subr.bf16.mxu0 0
        %2265 = vmatpush1.bf16.msra.mxu0 0
        %2266 = vmatprep.subr.bf16.mxu0 0
        %2267 = vmatpush1.bf16.msra.mxu0 0
        %2268 = vmatprep.subr.bf16.mxu0 0
        %2269 = vmatpush1.bf16.msra.mxu0 0
        %2270 = vmatprep.subr.bf16.mxu0 0
        %2271 = vmatpush1.bf16.msra.mxu0 0
        %2272 = vmatprep.subr.bf16.mxu0 0
        %2273 = vmatpush1.bf16.msra.mxu0 0
        %2274 = vmatprep.subr.bf16.mxu0 0
        %2275 = vmatpush1.bf16.msra.mxu0 0
        %2276 = vmatprep.mubr.bf16.mxu0 0
        %2277 = vmatmul.mubr.bf16.gmra.mrb[0].mxu0 %v2242
        %v2278 = vpop.f32.mrb[0].mxu0
        %v2279 = vadd.f32 %v2146, %v2278
        %v2280 = vpop.f32.mrb[0].mxu0
        %v2281 = vpop.f32.mrb[0].mxu0
        %v2282 = vpop.f32.mrb[0].mxu0
        %2283 = vdwg.mxu0
        %v2284 = vcombine.high %v2212, 0.0
        %v2286 = vunpack.c.l.s4 1983009808
        %v2287 = vunpack.c.0.s8 %v2286
        %v2288 = vlaneseq
        %v2289 = vshrl.u32 %v2288, 7
        %v2290 = vsub.s32 %v2287, %v2289
        %v2291 = vrot.slane %v2212, %v2290
        %v2293 = vunpack.c.l.s4 1983009808
        %v2294 = vunpack.c.0.s8 %v2293
        %v2295 = vlaneseq
        %v2296 = vshrl.u32 %v2295, 7
        %v2297 = vsub.s32 %v2294, %v2296
        %v2298 = vrot.slane %v2284, %v2297
        %v2299 = vcombine.high %v2279, 0.0
        %v2301 = vunpack.c.l.s4 1983009808
        %v2302 = vunpack.c.0.s8 %v2301
        %v2303 = vlaneseq
        %v2304 = vshrl.u32 %v2303, 7
        %v2305 = vsub.s32 %v2302, %v2304
        %v2306 = vrot.slane %v2279, %v2305
        %v2308 = vunpack.c.l.s4 1983009808
        %v2309 = vunpack.c.0.s8 %v2308
        %v2310 = vlaneseq
        %v2311 = vshrl.u32 %v2310, 7
        %v2312 = vsub.s32 %v2309, %v2311
        %v2313 = vrot.slane %v2299, %v2312
        %v2314 = vcombine.low %v2291, %v2306
        %v2315 = vcombine.high %v2291, %v2306
        %v2317 = vunpack.c.l.s4 1934713408
        %v2318 = vunpack.c.0.s8 %v2317
        %v2319 = vlaneseq
        %v2320 = vshrl.u32 %v2319, 7
        %v2321 = vsub.s32 %v2318, %v2320
        %v2322 = vrot.slane %v2314, %v2321
        %v2324 = vunpack.c.l.s4 1934713408
        %v2325 = vunpack.c.0.s8 %v2324
        %v2326 = vlaneseq
        %v2327 = vshrl.u32 %v2326, 7
        %v2328 = vsub.s32 %v2325, %v2327
        %v2329 = vrot.slane %v2315, %v2328
        %v2330 = vcombine.low %v2298, %v2313
        %v2331 = vcombine.high %v2298, %v2313
        %v2333 = vunpack.c.l.s4 1934713408
        %v2334 = vunpack.c.0.s8 %v2333
        %v2335 = vlaneseq
        %v2336 = vshrl.u32 %v2335, 7
        %v2337 = vsub.s32 %v2334, %v2336
        %v2338 = vrot.slane %v2330, %v2337
        %v2340 = vunpack.c.l.s4 1934713408
        %v2341 = vunpack.c.0.s8 %v2340
        %v2342 = vlaneseq
        %v2343 = vshrl.u32 %v2342, 7
        %v2344 = vsub.s32 %v2341, %v2343
        %v2345 = vrot.slane %v2331, %v2344
        %v2346 = vcombine.high %v2322, 0.0
        %v2347 = vcombine.high %v2329, 0.0
        %v2348 = vcombine.high %v2338, 0.0
        %v2349 = vcombine.high %v2345, 0.0
        %v2350 = vcombine.low %v2322, %v2329
        %v2352 = vunpack.c.l.s4 1983009808
        %v2353 = vunpack.c.0.s8 %v2352
        %v2354 = vlaneseq
        %v2355 = vshrl.u32 %v2354, 7
        %v2356 = vsub.s32 %v2353, %v2355
        %v2357 = vrot.slane %v2350, %v2356
        %v2358 = vcombine.low %v2346, %v2347
        %v2360 = vunpack.c.l.s4 1983009808
        %v2361 = vunpack.c.0.s8 %v2360
        %v2362 = vlaneseq
        %v2363 = vshrl.u32 %v2362, 7
        %v2364 = vsub.s32 %v2361, %v2363
        %v2365 = vrot.slane %v2358, %v2364
        %v2366 = vcombine.low %v2338, %v2345
        %v2368 = vunpack.c.l.s4 1983009808
        %v2369 = vunpack.c.0.s8 %v2368
        %v2370 = vlaneseq
        %v2371 = vshrl.u32 %v2370, 7
        %v2372 = vsub.s32 %v2369, %v2371
        %v2373 = vrot.slane %v2366, %v2372
        %v2374 = vcombine.low %v2348, %v2349
        %v2376 = vunpack.c.l.s4 1983009808
        %v2377 = vunpack.c.0.s8 %v2376
        %v2378 = vlaneseq
        %v2379 = vshrl.u32 %v2378, 7
        %v2380 = vsub.s32 %v2377, %v2379
        %v2381 = vrot.slane %v2374, %v2380
        %v2382 = vcombine.low %v2357, %v2365
        %v2384 = vunpack.c.l.s4 1934713408
        %v2385 = vunpack.c.0.s8 %v2384
        %v2386 = vlaneseq
        %v2387 = vshrl.u32 %v2386, 7
        %v2388 = vsub.s32 %v2385, %v2387
        %v2389 = vrot.slane %v2382, %v2388
        %v2390 = vcombine.low %v2373, %v2381
        %v2392 = vunpack.c.l.s4 1934713408
        %v2393 = vunpack.c.0.s8 %v2392
        %v2394 = vlaneseq
        %v2395 = vshrl.u32 %v2394, 7
        %v2396 = vsub.s32 %v2393, %v2395
        %v2397 = vrot.slane %v2390, %v2396
        %v2398 = vcombine.low %v2389, %v2397
        %v2399 = vcombine.high %v2389, %v2397
        %2401 = vrot.lane.b32.xlu0 %v2399, 16
        %v2402 = vpop.permute.xlu0 %2401
        %v2404 = vsel %vm1751, %v2398, %v2402
        %v2405 = vadd.f32 %v1822, %v2404
        %2406 = vst.msk [vmem:[%s610] sm:$0xff] %vm619, %v2405
        %s2407 = sand.u32 %s344, 1
        %s2408 = scalar_lea.sflag [#allocation5], %s2407
        %s2409 = sand.u32 %s344, 1
        %s2410 = smul.addr %s2409, 8
        %s2411 = scalar_lea.vmem [#allocation15], %s2410
        // Predicated region
        $region143: #{tpu_custom_call.1} parent=109 // pred_check
          %p2412 = pneg %p354
        $region144: #{tpu_custom_call.1} parent=109 // pred_check_branch
          %2414 = sbr.rel (%p2412) target = $region146
        $region145: #{tpu_custom_call.1} parent=109 // pred_region
          %s2416 = ssub.s32 128, 128
          %2417 = vsyncadd %s2408, %s2416
          %s2418 = smul.addr %s32, 128
          %s2419 = scalar_lea.hbm %s14, %s2418
          %s2421 = sshll.u32 %s2411, 4
          %s2422 = int_to_ptr.vmem [resolvable:$true] %s2421
          %2424 = dma.vmem_to_hbm [thread:$0]  %s2422, 128, %s2419, %s2408
        $region146: #{tpu_custom_call.1} parent=109 // pred_fallthru
          _
      $region110: #{tpu_custom_call.1} parent=5 // pred_fallthru
        _
      %p2425 = scmp.le.s32.totalorder 2, %s27
      // Predicated region
      $region147: #{tpu_custom_call.1} parent=5 // pred_check
        %p2426 = pneg %p2425
      $region148: #{tpu_custom_call.1} parent=5 // pred_check_branch
        %2428 = sbr.rel (%p2426) target = $region150
      $region149: #{tpu_custom_call.1} parent=5 // pred_region
        %s2429 = ssub.s32 %s27, 2
        // Predicated region
        $region151: #{tpu_custom_call.1} parent=149 // pred_check
          %p2430 = pneg %p360
        $region152: #{tpu_custom_call.1} parent=149 // pred_check_branch
          %2432 = sbr.rel (%p2430) target = $region154
        $region153: #{tpu_custom_call.1} parent=149 // pred_region
          %s2433 = sand.u32 %s345, 1
          %s2434 = scalar_lea.sflag [#allocation5], %s2433
          %s2435 = sand.u32 %s345, 1
          %s2436 = smul.addr %s2435, 8
          %s2437 = scalar_lea.vmem [#allocation15], %s2436
          %2438 = dma.done %s2434, 128
        $region154: #{tpu_custom_call.1} parent=149 // pred_fallthru
          _
      $region150: #{tpu_custom_call.1} parent=5 // pred_fallthru
        _
    $region6: #{tpu_custom_call.1} parent=1 // loop_footer
      %s31 = sadd.s32 1, %s27
    $region7: #{tpu_custom_call.1} parent=1 // loop_footer_branch
      %26 = sbr.rel target = $region3
    $region8: #{tpu_custom_call.1} parent=1 // loop_exit
      _
    %2439 = vsyncpa [#allocation4], 1
    %s2440 = scalar_lea.sflag [#allocation4], 1
    %2441 = vsyncpa %s2440, 1
    %2442 = vsyncpa [#allocation7], 1
    %2443 = vsyncpa [#allocation10], 1
    %2444 = vsyncpa [#allocation13], 1
    %2445 = vsyncpa [#allocation5], 1
    %s2446 = scalar_lea.sflag [#allocation5], 1
    %2447 = vsyncpa %s2446, 1

</llo_original>
